<compile_context>
chip_gen: v5e
topology: v5e:2x2
jax: 0.10.0
libtpu: 0.0.40
codegen_flags: <defaults>
</compile_context>

<pallas_src>
import numpy as np
import jax
import jax.numpy as jnp
from jax.experimental import pallas as pl
from jax.experimental.pallas import tpu as pltpu

# --- configuration: SeparatorClassifier(qbits_num=2, channels_per_rho=2,
#                                        filters_ratio=4.0, output_size=1, fc_num=3)
QBITS = 2
CH_PER_RHO = 2
FILTERS_RATIO = 4.0
OUTPUT_SIZE = 1
FC_NUM = 3
DIM = 2                                     # 2x2 density matrices / 2x2 conv kernel
INPUT_CH = QBITS * 2 * CH_PER_RHO           # 8
OUT_CH = int(INPUT_CH * FILTERS_RATIO)      # 32
FC_DIMS = [int(OUT_CH * (OUT_CH / 128.0) ** (-i / FC_NUM)) for i in range(1, FC_NUM + 1)]  # [50, 80, 128]

K_IN = INPUT_CH * DIM * DIM                 # 32  (flattened conv input per sample)
NUM_RELU = 2 + (FC_NUM - 1)                 # conv, f1, fc_num-1 hidden layers = 4
PAD_DIM = 128                               # all layer widths padded to 128
TILE_N = 256                                # batch tile (multiple of 128; use 128 on v5e)


# ---------------------------------------------------------------------------
# sep_met: plain-JAX port (complex-valued kron/trace — no Mosaic complex path).
# ---------------------------------------------------------------------------
def sep_met_jax(output, data):
    """JAX port of sep_met(output, data) -> (metric (N,1), rho_diff)."""
    # TODO(synk): original uses torch.cdouble (complex128); complex64 used here (x64 disabled).
    ch = output[0].shape[1] // 2
    rho = jnp.zeros(data[:, 0, :, :].shape, dtype=jnp.complex64)
    trace_loss = 0.0
    hermitian_loss = 0.0
    for i in range(ch):
        dms = output[0]
        rho_i = dms[:, i, :, :] + 1j * dms[:, ch + i, :, :]
        for j in range(1, len(output)):
            dms = output[j]
            chj = dms.shape[1] // 2
            rho_j = dms[:, i, :, :] + 1j * dms[:, chj + i, :, :]
            tr = jnp.trace(rho_j, axis1=-2, axis2=-1)
            trace_loss = trace_loss + jnp.mean(jnp.abs(tr - 1.0))
            hermitian_loss = hermitian_loss + jnp.mean(
                jnp.abs(jnp.conj(jnp.swapaxes(rho_j, -1, -2)) - rho_j))
            rho_i = jax.vmap(jnp.kron)(rho_i, rho_j)
        rho = rho + rho_i
    rho = rho / ch
    rho_s = jnp.stack((rho.real, rho.imag), axis=1)
    rho_diff = jnp.abs(rho_s - data)
    metric = (jnp.mean(rho_diff.reshape(data.shape[0], -1), axis=1, keepdims=True)
              + 0.1 * (trace_loss + hermitian_loss) / (ch * (len(output) - 1)))
    return metric, rho_diff


# ---------------------------------------------------------------------------
# Pallas kernel: per batch tile (TILE_N samples on the lane axis).
#   x_ref      : (K_IN, TILE_N)        flattened conv input, feature-major
#   m_ref      : (1, TILE_N)           sep_met metric column, as a row
#   w_ref      : (NUM_RELU, 128, 128)  zero-padded layer weights (out, in)
#   b_ref      : (NUM_RELU, 128, 1)    zero-padded biases
#   fw_ref     : (1, 128)              fout weight, feature part (zero padded)
#   fs_ref     : (2,)  SMEM            [fout metric weight, fout bias]
#   out_ref    : (1, TILE_N)           sigmoid(logits), lane-dense
# ---------------------------------------------------------------------------
def _classifier_kernel(x_ref, m_ref, w_ref, b_ref, fw_ref, fs_ref, out_ref):
    tile_n = x_ref.shape[1]

    # Pad input features to 128 rows so every layer is a uniform 128x128 matmul.
    h = jnp.concatenate(
        [x_ref[...], jnp.zeros((PAD_DIM - K_IN, tile_n), jnp.float32)], axis=0)

    # conv-as-matmul, f1, hidden FCs — all with ReLU (zero padding is exact).
    for i in range(NUM_RELU):                       # static, unrolled
        w = w_ref[i]                                # (128, 128)
        b = b_ref[i]                                # (128, 1) -> broadcast on lanes
        h = jnp.maximum(
            jnp.dot(w, h, preferred_element_type=jnp.float32) + b, 0.0)

    # fout: cat((h, m)) @ W.T  ==  Wx @ h + wm * m  (+ bias)
    logits = jnp.dot(fw_ref[...], h, preferred_element_type=jnp.float32)  # (1, TILE_N)
    logits = logits + fs_ref[0] * m_ref[...] + fs_ref[1]

    # sigmoid via EUP exp + EUP approx reciprocal (no VALU divide)
    out_ref[...] = pl.reciprocal(1.0 + jnp.exp(-logits), approx=True)


# ---------------------------------------------------------------------------
# one-time parameter packing (hoisted out of the per-call path)
# ---------------------------------------------------------------------------
def pack_params(p):
    assert OUT_CH <= PAD_DIM and max(FC_DIMS) <= PAD_DIM and K_IN <= PAD_DIM

    def pad_w(w):                                   # (out, in) -> (128, 128)
        out_d, in_d = w.shape
        return jnp.zeros((PAD_DIM, PAD_DIM), jnp.float32).at[:out_d, :in_d].set(
            w.astype(jnp.float32))

    def pad_b(b):                                   # (out,) -> (128, 1)
        return jnp.zeros((PAD_DIM, 1), jnp.float32).at[:b.shape[0], 0].set(
            b.astype(jnp.float32))

    ws = [p['conv_w'].reshape(OUT_CH, -1), p['f1_w']]   # conv flattened (Cout, Cin*kh*kw)
    bs = [p['conv_b'], p['f1_b']]
    for w, b in p['hidden']:
        ws.append(w)
        bs.append(b)
    assert len(ws) == NUM_RELU

    d_last = FC_DIMS[-1]
    fout_w = p['fout_w'].astype(jnp.float32)            # (1, d_last + 1)
    fout_row = jnp.zeros((1, PAD_DIM), jnp.float32).at[:, :d_last].set(
        fout_w[:, :d_last])
    fout_scalars = jnp.array(
        [fout_w[0, d_last], p['fout_b'].astype(jnp.float32)[0]], jnp.float32)

    return {
        'w_slab': jnp.stack([pad_w(w) for w in ws]),     # (4, 128, 128)
        'b_slab': jnp.stack([pad_b(b) for b in bs]),     # (4, 128, 1)
        'fout_row': fout_row,                            # (1, 128)
        'fout_scalars': fout_scalars,                    # (2,) -> SMEM
    }


# ---------------------------------------------------------------------------
# batched forward: grid over batch tiles, weights resident in VMEM
# ---------------------------------------------------------------------------
def separator_classifier_forward(x, sep_metric, packed, *, tile_n=TILE_N):
    n = x.shape[0]
    num_tiles = pl.cdiv(n, tile_n)
    n_pad = num_tiles * tile_n

    # feature-major, batch on the lane axis, zero-padded to a whole tile
    x_flat = x.reshape(n, K_IN).astype(jnp.float32)
    x_t = jnp.zeros((K_IN, n_pad), jnp.float32).at[:, :n].set(x_flat.T)
    m_row = jnp.zeros((1, n_pad), jnp.float32).at[:, :n].set(
        sep_metric.astype(jnp.float32).T)

    out = pl.pallas_call(
        _classifier_kernel,
        out_shape=jax.ShapeDtypeStruct((1, n_pad), jnp.float32),
        grid=(num_tiles,),
        in_specs=[
            pl.BlockSpec((K_IN, tile_n), lambda i: (0, i)),                 # x tile
            pl.BlockSpec((1, tile_n), lambda i: (0, i)),                    # metric tile
            pl.BlockSpec((NUM_RELU, PAD_DIM, PAD_DIM), lambda i: (0, 0, 0)),  # weights (resident)
            pl.BlockSpec((NUM_RELU, PAD_DIM, 1), lambda i: (0, 0, 0)),        # biases  (resident)
            pl.BlockSpec((1, PAD_DIM), lambda i: (0, 0)),                     # fout feature row
            pl.BlockSpec(memory_space=pltpu.MemorySpace.SMEM),                # fout scalars
        ],
        out_specs=pl.BlockSpec((1, tile_n), lambda i: (0, i)),
        compiler_params=pltpu.CompilerParams(
            dimension_semantics=("parallel",)),
    )(x_t, m_row, packed['w_slab'], packed['b_slab'],
      packed['fout_row'], packed['fout_scalars'])

    return out[0, :n].reshape(n, OUTPUT_SIZE)


# ---------------------------------------------------------------------------
# deterministic parameter init (PyTorch-default-style U(-1/sqrt(fan_in), +))
# ---------------------------------------------------------------------------
def init_params(key):
    keys = jax.random.split(key, 16)

    def uniform(k, shape, fan_in):
        bound = 1.0 / np.sqrt(fan_in)
        return jax.random.uniform(k, shape, jnp.float32, -bound, bound)

    p = {}
    fan_conv = INPUT_CH * DIM * DIM
    p['conv_w'] = uniform(keys[0], (OUT_CH, INPUT_CH, DIM, DIM), fan_conv)
    p['conv_b'] = uniform(keys[1], (OUT_CH,), fan_conv)
    p['f1_w'] = uniform(keys[2], (FC_DIMS[0], OUT_CH), OUT_CH)
    p['f1_b'] = uniform(keys[3], (FC_DIMS[0],), OUT_CH)
    hidden = []
    ki = 4
    for i in range(FC_NUM - 1):
        hidden.append((uniform(keys[ki], (FC_DIMS[i + 1], FC_DIMS[i]), FC_DIMS[i]),
                       uniform(keys[ki + 1], (FC_DIMS[i + 1],), FC_DIMS[i])))
        ki += 2
    p['hidden'] = hidden
    p['fout_w'] = uniform(keys[ki], (OUTPUT_SIZE, FC_DIMS[-1] + 1), FC_DIMS[-1] + 1)
    p['fout_b'] = uniform(keys[ki + 1], (OUTPUT_SIZE,), FC_DIMS[-1] + 1)
    return p


# ---------------------------------------------------------------------------
# pure-JAX reference (true NCHW conv) used to validate the kernel
# ---------------------------------------------------------------------------
def reference_forward(x, sep_metric, p):
    y = jax.lax.conv_general_dilated(
        x, p['conv_w'], window_strides=(1, 1), padding='VALID',
        dimension_numbers=('NCHW', 'OIHW', 'NCHW'))
    y = jnp.maximum(y + p['conv_b'][None, :, None, None], 0.0)
    y = y.reshape(-1, OUT_CH)                       # x.view(-1, out_ch); spatial is 1x1
    y = jnp.maximum(y @ p['f1_w'].T + p['f1_b'], 0.0)
    for w, b in p['hidden']:
        y = jnp.maximum(y @ w.T + b, 0.0)
    y = jnp.concatenate([y, sep_metric], axis=1)
    return jax.nn.sigmoid(y @ p['fout_w'].T + p['fout_b'])


if __name__ == "__main__":
    key = jax.random.PRNGKey(0)
    k_params, k_out0, k_out1, k_data = jax.random.split(key, 4)
    params = init_params(k_params)
    packed = pack_params(params)                    # one-time weight packing

    N = 300                                         # >1 batch tile, exercises padding
    out0 = jax.random.normal(k_out0, (N, 2 * CH_PER_RHO, DIM, DIM), jnp.float32)
    out1 = jax.random.normal(k_out1, (N, 2 * CH_PER_RHO, DIM, DIM), jnp.float32)
    data = jax.random.normal(k_data, (N, 2, DIM ** QBITS, DIM ** QBITS), jnp.float32)

    @jax.jit
    def full_forward(o0, o1, dat, pk):
        metric, _ = sep_met_jax([o0, o1], dat)      # (N, 1)
        x = jnp.concatenate([o0, o1], axis=1)       # (N, INPUT_CH, 2, 2) NCHW
        return separator_classifier_forward(x, metric, pk)

    out = jax.block_until_ready(full_forward(out0, out1, data, packed))

    # validate against the pure-XLA reference
    metric_ref, _ = sep_met_jax([out0, out1], data)
    x_ref = jnp.concatenate([out0, out1], axis=1)
    ref = reference_forward(x_ref, metric_ref, params)
    # tolerance slightly loosened for the EUP approximate reciprocal in the sigmoid
    np.testing.assert_allclose(np.asarray(out), np.asarray(ref), rtol=2e-3, atol=2e-3)
    print("KERNEL_OK")
</pallas_src>

<mosaic_0001>
module attributes {stable_mosaic.version = 11 : i64} {
  func.func @_classifier_kernel(%arg0: i32, %arg1: memref<32x256xf32, #tpu.memory_space<vmem>>, %arg2: memref<1x256xf32, #tpu.memory_space<vmem>>, %arg3: memref<4x128x128xf32, #tpu.memory_space<vmem>>, %arg4: memref<4x128x1xf32, #tpu.memory_space<vmem>>, %arg5: memref<1x128xf32, #tpu.memory_space<vmem>>, %arg6: memref<2xf32, #tpu.memory_space<smem>>, %arg7: memref<1x256xf32, #tpu.memory_space<vmem>>) attributes {dimension_semantics = [#tpu.dimension_semantics<parallel>], iteration_bounds = array<i64: 2>, scalar_prefetch = 0 : i64, scratch_operands = 0 : i64, tpu.core_type = #tpu.core_type<tc>, window_params = [{transform_indices = @transform_0, window_bounds = array<i64: 32, 256>}, {transform_indices = @transform_1, window_bounds = array<i64: 1, 256>}, {pipeline_mode = #tpu.pipeline_mode<synchronous>, transform_indices = @transform_2, window_bounds = array<i64: 4, 128, 128>}, {pipeline_mode = #tpu.pipeline_mode<synchronous>, transform_indices = @transform_3, window_bounds = array<i64: 4, 128, 1>}, {pipeline_mode = #tpu.pipeline_mode<synchronous>, transform_indices = @transform_4, window_bounds = array<i64: 1, 128>}, {transform_indices = @transform_5, window_bounds = array<i64: 2>}, {transform_indices = @transform_6, window_bounds = array<i64: 1, 256>}]} {
    %c0 = arith.constant 0 : index
    %c0_0 = arith.constant 0 : index
    %0 = vector.load %arg1[%c0, %c0_0] : memref<32x256xf32, #tpu.memory_space<vmem>>, vector<32x256xf32>
    %cst = arith.constant 0.000000e+00 : f32
    %1 = vector.broadcast %cst : f32 to vector<96x256xf32>
    %2 = tpu.concatenate %0, %1 in 0 : vector<32x256xf32>, vector<96x256xf32> -> vector<128x256xf32>
    %c0_1 = arith.constant 0 : index
    %c0_2 = arith.constant 0 : index
    %c0_3 = arith.constant 0 : index
    %3 = vector.load %arg3[%c0_1, %c0_2, %c0_3] : memref<4x128x128xf32, #tpu.memory_space<vmem>>, vector<1x128x128xf32>
    %4 = vector.shape_cast %3 : vector<1x128x128xf32> to vector<128x128xf32>
    %c0_4 = arith.constant 0 : index
    %c0_5 = arith.constant 0 : index
    %c0_6 = arith.constant 0 : index
    %5 = vector.load %arg4[%c0_4, %c0_5, %c0_6] : memref<4x128x1xf32, #tpu.memory_space<vmem>>, vector<1x128x1xf32>
    %6 = vector.shape_cast %5 : vector<1x128x1xf32> to vector<128x1xf32>
    %cst_7 = arith.constant dense<0.000000e+00> : vector<128x256xf32>
    %7 = tpu.matmul %4, %2, %cst_7 {dimension_numbers = #tpu.dot_dimension_numbers<[1], [0], [0], [1], [0, 0, 1, 1], [], []>} : vector<128x128xf32>, vector<128x256xf32>, vector<128x256xf32> -> vector<128x256xf32>
    %8 = vector.broadcast %6 : vector<128x1xf32> to vector<128x256xf32>
    %9 = arith.addf %7, %8 : vector<128x256xf32>
    %cst_8 = arith.constant 0.000000e+00 : f32
    %10 = vector.broadcast %cst_8 : f32 to vector<128x256xf32>
    %11 = arith.maximumf %9, %10 : vector<128x256xf32>
    %c1 = arith.constant 1 : index
    %c0_9 = arith.constant 0 : index
    %c0_10 = arith.constant 0 : index
    %12 = vector.load %arg3[%c1, %c0_9, %c0_10] : memref<4x128x128xf32, #tpu.memory_space<vmem>>, vector<1x128x128xf32>
    %13 = vector.shape_cast %12 : vector<1x128x128xf32> to vector<128x128xf32>
    %c1_11 = arith.constant 1 : index
    %c0_12 = arith.constant 0 : index
    %c0_13 = arith.constant 0 : index
    %14 = vector.load %arg4[%c1_11, %c0_12, %c0_13] : memref<4x128x1xf32, #tpu.memory_space<vmem>>, vector<1x128x1xf32>
    %15 = vector.shape_cast %14 : vector<1x128x1xf32> to vector<128x1xf32>
    %cst_14 = arith.constant dense<0.000000e+00> : vector<128x256xf32>
    %16 = tpu.matmul %13, %11, %cst_14 {dimension_numbers = #tpu.dot_dimension_numbers<[1], [0], [0], [1], [0, 0, 1, 1], [], []>} : vector<128x128xf32>, vector<128x256xf32>, vector<128x256xf32> -> vector<128x256xf32>
    %17 = vector.broadcast %15 : vector<128x1xf32> to vector<128x256xf32>
    %18 = arith.addf %16, %17 : vector<128x256xf32>
    %cst_15 = arith.constant 0.000000e+00 : f32
    %19 = vector.broadcast %cst_15 : f32 to vector<128x256xf32>
    %20 = arith.maximumf %18, %19 : vector<128x256xf32>
    %c2 = arith.constant 2 : index
    %c0_16 = arith.constant 0 : index
    %c0_17 = arith.constant 0 : index
    %21 = vector.load %arg3[%c2, %c0_16, %c0_17] : memref<4x128x128xf32, #tpu.memory_space<vmem>>, vector<1x128x128xf32>
    %22 = vector.shape_cast %21 : vector<1x128x128xf32> to vector<128x128xf32>
    %c2_18 = arith.constant 2 : index
    %c0_19 = arith.constant 0 : index
    %c0_20 = arith.constant 0 : index
    %23 = vector.load %arg4[%c2_18, %c0_19, %c0_20] : memref<4x128x1xf32, #tpu.memory_space<vmem>>, vector<1x128x1xf32>
    %24 = vector.shape_cast %23 : vector<1x128x1xf32> to vector<128x1xf32>
    %cst_21 = arith.constant dense<0.000000e+00> : vector<128x256xf32>
    %25 = tpu.matmul %22, %20, %cst_21 {dimension_numbers = #tpu.dot_dimension_numbers<[1], [0], [0], [1], [0, 0, 1, 1], [], []>} : vector<128x128xf32>, vector<128x256xf32>, vector<128x256xf32> -> vector<128x256xf32>
    %26 = vector.broadcast %24 : vector<128x1xf32> to vector<128x256xf32>
    %27 = arith.addf %25, %26 : vector<128x256xf32>
    %cst_22 = arith.constant 0.000000e+00 : f32
    %28 = vector.broadcast %cst_22 : f32 to vector<128x256xf32>
    %29 = arith.maximumf %27, %28 : vector<128x256xf32>
    %c3 = arith.constant 3 : index
    %c0_23 = arith.constant 0 : index
    %c0_24 = arith.constant 0 : index
    %30 = vector.load %arg3[%c3, %c0_23, %c0_24] : memref<4x128x128xf32, #tpu.memory_space<vmem>>, vector<1x128x128xf32>
    %31 = vector.shape_cast %30 : vector<1x128x128xf32> to vector<128x128xf32>
    %c3_25 = arith.constant 3 : index
    %c0_26 = arith.constant 0 : index
    %c0_27 = arith.constant 0 : index
    %32 = vector.load %arg4[%c3_25, %c0_26, %c0_27] : memref<4x128x1xf32, #tpu.memory_space<vmem>>, vector<1x128x1xf32>
    %33 = vector.shape_cast %32 : vector<1x128x1xf32> to vector<128x1xf32>
    %cst_28 = arith.constant dense<0.000000e+00> : vector<128x256xf32>
    %34 = tpu.matmul %31, %29, %cst_28 {dimension_numbers = #tpu.dot_dimension_numbers<[1], [0], [0], [1], [0, 0, 1, 1], [], []>} : vector<128x128xf32>, vector<128x256xf32>, vector<128x256xf32> -> vector<128x256xf32>
    %35 = vector.broadcast %33 : vector<128x1xf32> to vector<128x256xf32>
    %36 = arith.addf %34, %35 : vector<128x256xf32>
    %cst_29 = arith.constant 0.000000e+00 : f32
    %37 = vector.broadcast %cst_29 : f32 to vector<128x256xf32>
    %38 = arith.maximumf %36, %37 : vector<128x256xf32>
    %c0_30 = arith.constant 0 : index
    %c0_31 = arith.constant 0 : index
    %39 = vector.load %arg5[%c0_30, %c0_31] : memref<1x128xf32, #tpu.memory_space<vmem>>, vector<1x128xf32>
    %cst_32 = arith.constant dense<0.000000e+00> : vector<1x256xf32>
    %40 = tpu.matmul %39, %38, %cst_32 {dimension_numbers = #tpu.dot_dimension_numbers<[1], [0], [0], [1], [0, 0, 1, 1], [], []>} : vector<1x128xf32>, vector<128x256xf32>, vector<1x256xf32> -> vector<1x256xf32>
    %c0_33 = arith.constant 0 : index
    %41 = memref.load %arg6[%c0_33] : memref<2xf32, #tpu.memory_space<smem>>
    %c0_34 = arith.constant 0 : index
    %c0_35 = arith.constant 0 : index
    %42 = vector.load %arg2[%c0_34, %c0_35] : memref<1x256xf32, #tpu.memory_space<vmem>>, vector<1x256xf32>
    %43 = vector.broadcast %41 : f32 to vector<1x256xf32>
    %44 = arith.mulf %43, %42 : vector<1x256xf32>
    %45 = arith.addf %40, %44 : vector<1x256xf32>
    %c1_36 = arith.constant 1 : index
    %46 = memref.load %arg6[%c1_36] : memref<2xf32, #tpu.memory_space<smem>>
    %47 = vector.broadcast %46 : f32 to vector<1x256xf32>
    %48 = arith.addf %45, %47 : vector<1x256xf32>
    %cst_37 = arith.constant 0.000000e+00 : f32
    %49 = vector.broadcast %cst_37 : f32 to vector<1x256xf32>
    %50 = arith.subf %49, %48 : vector<1x256xf32>
    %51 = math.exp %50 : vector<1x256xf32>
    %cst_38 = arith.constant 1.000000e+00 : f32
    %52 = vector.broadcast %cst_38 : f32 to vector<1x256xf32>
    %53 = arith.addf %52, %51 : vector<1x256xf32>
    %54 = tpu.reciprocal %53 {approx = true} : vector<1x256xf32> -> vector<1x256xf32>
    %c0_39 = arith.constant 0 : index
    %c0_40 = arith.constant 0 : index
    %55 = vector.load %arg7[%c0_39, %c0_40] : memref<1x256xf32, #tpu.memory_space<vmem>>, vector<1x256xf32>
    tpu.vector_store %arg7[%c0_39, %c0_40], %54 {strides = array<i32>} : memref<1x256xf32, #tpu.memory_space<vmem>>, vector<1x256xf32>,
    return
  }
  func.func @transform_0(%arg0: i32) -> (i32, i32) {
    %c0_i32 = arith.constant 0 : i32
    %c0_i32_0 = arith.constant 0 : i32
    return %c0_i32, %arg0 : i32, i32
  }
  func.func @transform_1(%arg0: i32) -> (i32, i32) {
    %c0_i32 = arith.constant 0 : i32
    %c0_i32_0 = arith.constant 0 : i32
    return %c0_i32, %arg0 : i32, i32
  }
  func.func @transform_2(%arg0: i32) -> (i32, i32, i32) {
    %c0_i32 = arith.constant 0 : i32
    %c0_i32_0 = arith.constant 0 : i32
    %c0_i32_1 = arith.constant 0 : i32
    %c0_i32_2 = arith.constant 0 : i32
    return %c0_i32, %c0_i32_0, %c0_i32_1 : i32, i32, i32
  }
  func.func @transform_3(%arg0: i32) -> (i32, i32, i32) {
    %c0_i32 = arith.constant 0 : i32
    %c0_i32_0 = arith.constant 0 : i32
    %c0_i32_1 = arith.constant 0 : i32
    %c0_i32_2 = arith.constant 0 : i32
    return %c0_i32, %c0_i32_0, %c0_i32_1 : i32, i32, i32
  }
  func.func @transform_4(%arg0: i32) -> (i32, i32) {
    %c0_i32 = arith.constant 0 : i32
    %c0_i32_0 = arith.constant 0 : i32
    %c0_i32_1 = arith.constant 0 : i32
    return %c0_i32, %c0_i32_0 : i32, i32
  }
  func.func @transform_5(%arg0: i32) -> i32 {
    %c0_i32 = arith.constant 0 : i32
    %c0_i32_0 = arith.constant 0 : i32
    return %c0_i32 : i32
  }
  func.func @transform_6(%arg0: i32) -> (i32, i32) {
    %c0_i32 = arith.constant 0 : i32
    %c0_i32_0 = arith.constant 0 : i32
    return %c0_i32, %arg0 : i32, i32
  }
}

</mosaic_0001>

<llo_original>
// kernel: full_forward.1
$region0: #{full_forward.1}
  #allocation0 [shape = 'u32[]', space=smem, size = 0x4, offset = 0x4, fixed_abs, tag = 'smem constant byte address 0x4 - core index']
  #allocation1 [shape = 'u32[72,128]{1,0:T(1,128)}', space=vmem, size = 0x9000, scoped, tag = 'internal scratch']
  %s0 = inlined_call_operand.vmem [shape: f32[32,512], index: 0, kind: input, shape index: {}]
  %s1 = inlined_call_operand.vmem [shape: f32[1,512], index: 1, kind: input, shape index: {}]
  %s2 = inlined_call_operand.vmem [shape: f32[4,128,128], index: 2, kind: input, shape index: {}]
  %s3 = inlined_call_operand.vmem [shape: f32[4,128,1], index: 3, kind: input, shape index: {}]
  %s4 = inlined_call_operand.vmem [shape: f32[1,128], index: 4, kind: input, shape index: {}]
  %s5 = inlined_call_operand.vmem [shape: f32[2], index: 5, kind: input, shape index: {}]
  %s6 = inlined_call_operand.vmem [shape: f32[1,512], index: 6, kind: output, shape index: {}]
  %s7 = sld [smem:[#allocation0]]
  $region84: #{full_forward.1} parent=0
    _
  %s9 = ssub.s32 1, %s7
  %s10 = scalar_select 0, %s9, %s7
  $region1: #{full_forward.1} parent=0
    #allocation2 [shape = 'u8[65536]{0}', space=vmem, size = 0x10000, scoped, tag = 'input window, operand 0']
    #allocation3 [shape = 'u8[512]{0}', space=smem, size = 0x200, scoped, tag = 'input window, operand 5, single buffered']
    #allocation4 [shape = 's32[2]{0}', space=sflag, size = 0x8, scoped, tag = 'scoped memory for full_forward.1']
    %11 = vsyncpa [#allocation4], 0
    loop: start=0, step=1, limit=4
    $region2: #{full_forward.1} parent=1 // loop_pre_header
      _
    $region3: #{full_forward.1} parent=1 // loop_header
      %s13 = sphi 0, %s17
      %p14 = scmp.ge.s32.totalorder %s13, 4
      %s23 = sphi 0, %s25
      %s26 = sphi 0, %s23
      %s27 = sphi 0, %s26
      %s43 = sphi 0, %s27
      %s49 = sphi 0, %s51
      %s52 = sphi 0, %s49
      %s53 = sphi 0, %s52
      %s69 = sphi 0, %s53
      %s73 = sphi 0, %s73
      %s75 = sphi 0, %s73
      %s76 = sphi 0, %s75
      %s90 = sphi 0, %s76
      %s94 = sphi 0, %s94
      %s96 = sphi 0, %s94
      %s97 = sphi 0, %s96
      %s111 = sphi 0, %s97
      %s115 = sphi 0, %s115
      %s117 = sphi 0, %s115
      %s118 = sphi 0, %s117
      %s132 = sphi 0, %s118
      %s136 = sphi 0, %s136
      %s138 = sphi 0, %s136
      %s139 = sphi 0, %s138
      %s153 = sphi 0, %s139
      %s159 = sphi 0, %s161
      %s162 = sphi 0, %s159
      %s163 = sphi 0, %s162
      %s179 = sphi 0, %s163
    $region4: #{full_forward.1} parent=1 // loop_header_branch
      %16 = sbr.rel (%p14) target = $region8
    $region5: #{full_forward.1} parent=1 // loop_body
      %s18 = ssub.s32 %s13, 1
      %s19 = ssub.s32 %s13, 2
      %s20 = sadd.s32 %s13, 1
      %s21 = ssub.s32 %s13, %s20
      %p22 = scmp.eq.s32.totalorder %s21, 0
      %s24 = sadd.s32 %s23, 1
      %s25 = scalar_select %p22, %s23, %s24
      %p28 = pneg %p22
      %p29 = scmp.eq.s32.totalorder %s13, 1
      %p30 = por %p28, %p29
      %p31 = scmp.ne.s32.totalorder %s23, %s26
      %p32 = scmp.eq.s32.totalorder %s13, 0
      %p33 = por %p31, %p32
      %p34 = scmp.ne.s32.totalorder %s23, %s26
      %p35 = scmp.eq.s32.totalorder %s18, 1
      %p36 = por %p34, %p35
      %p37 = scmp.ne.s32.totalorder %s26, %s27
      %p38 = scmp.eq.s32.totalorder %s18, 0
      %p39 = por %p37, %p38
      %p40 = scmp.ne.s32.totalorder %s26, %s27
      %p41 = scmp.eq.s32.totalorder %s19, 1
      %p42 = por %p40, %p41
      %p44 = scmp.ne.s32.totalorder %s27, %s43
      %p45 = scmp.eq.s32.totalorder %s19, 0
      %p46 = por %p44, %p45
      %s47 = ssub.s32 %s13, %s20
      %p48 = scmp.eq.s32.totalorder %s47, 0
      %s50 = sadd.s32 %s49, 1
      %s51 = scalar_select %p48, %s49, %s50
      %p54 = pneg %p48
      %p55 = scmp.eq.s32.totalorder %s13, 1
      %p56 = por %p54, %p55
      %p57 = scmp.ne.s32.totalorder %s49, %s52
      %p58 = scmp.eq.s32.totalorder %s13, 0
      %p59 = por %p57, %p58
      %p60 = scmp.ne.s32.totalorder %s49, %s52
      %p61 = scmp.eq.s32.totalorder %s18, 1
      %p62 = por %p60, %p61
      %p63 = scmp.ne.s32.totalorder %s52, %s53
      %p64 = scmp.eq.s32.totalorder %s18, 0
      %p65 = por %p63, %p64
      %p66 = scmp.ne.s32.totalorder %s52, %s53
      %p67 = scmp.eq.s32.totalorder %s19, 1
      %p68 = por %p66, %p67
      %p70 = scmp.ne.s32.totalorder %s53, %s69
      %p71 = scmp.eq.s32.totalorder %s19, 0
      %p72 = por %p70, %p71
      %s74 = sadd.s32 %s73, 1
      %p77 = scmp.eq.s32.totalorder %s13, 1
      %p78 = scmp.ne.s32.totalorder %s73, %s75
      %p79 = scmp.eq.s32.totalorder %s13, 0
      %p80 = por %p78, %p79
      %p81 = scmp.ne.s32.totalorder %s73, %s75
      %p82 = scmp.eq.s32.totalorder %s18, 1
      %p83 = por %p81, %p82
      %p84 = scmp.ne.s32.totalorder %s75, %s76
      %p85 = scmp.eq.s32.totalorder %s18, 0
      %p86 = por %p84, %p85
      %p87 = scmp.ne.s32.totalorder %s75, %s76
      %p88 = scmp.eq.s32.totalorder %s19, 1
      %p89 = por %p87, %p88
      %p91 = scmp.ne.s32.totalorder %s76, %s90
      %p92 = scmp.eq.s32.totalorder %s19, 0
      %p93 = por %p91, %p92
      %s95 = sadd.s32 %s94, 1
      %p98 = scmp.eq.s32.totalorder %s13, 1
      %p99 = scmp.ne.s32.totalorder %s94, %s96
      %p100 = scmp.eq.s32.totalorder %s13, 0
      %p101 = por %p99, %p100
      %p102 = scmp.ne.s32.totalorder %s94, %s96
      %p103 = scmp.eq.s32.totalorder %s18, 1
      %p104 = por %p102, %p103
      %p105 = scmp.ne.s32.totalorder %s96, %s97
      %p106 = scmp.eq.s32.totalorder %s18, 0
      %p107 = por %p105, %p106
      %p108 = scmp.ne.s32.totalorder %s96, %s97
      %p109 = scmp.eq.s32.totalorder %s19, 1
      %p110 = por %p108, %p109
      %p112 = scmp.ne.s32.totalorder %s97, %s111
      %p113 = scmp.eq.s32.totalorder %s19, 0
      %p114 = por %p112, %p113
      %s116 = sadd.s32 %s115, 1
      %p119 = scmp.eq.s32.totalorder %s13, 1
      %p120 = scmp.ne.s32.totalorder %s115, %s117
      %p121 = scmp.eq.s32.totalorder %s13, 0
      %p122 = por %p120, %p121
      %p123 = scmp.ne.s32.totalorder %s115, %s117
      %p124 = scmp.eq.s32.totalorder %s18, 1
      %p125 = por %p123, %p124
      %p126 = scmp.ne.s32.totalorder %s117, %s118
      %p127 = scmp.eq.s32.totalorder %s18, 0
      %p128 = por %p126, %p127
      %p129 = scmp.ne.s32.totalorder %s117, %s118
      %p130 = scmp.eq.s32.totalorder %s19, 1
      %p131 = por %p129, %p130
      %p133 = scmp.ne.s32.totalorder %s118, %s132
      %p134 = scmp.eq.s32.totalorder %s19, 0
      %p135 = por %p133, %p134
      %s137 = sadd.s32 %s136, 1
      %p140 = scmp.eq.s32.totalorder %s13, 1
      %p141 = scmp.ne.s32.totalorder %s136, %s138
      %p142 = scmp.eq.s32.totalorder %s13, 0
      %p143 = por %p141, %p142
      %p144 = scmp.ne.s32.totalorder %s136, %s138
      %p145 = scmp.eq.s32.totalorder %s18, 1
      %p146 = por %p144, %p145
      %p147 = scmp.ne.s32.totalorder %s138, %s139
      %p148 = scmp.eq.s32.totalorder %s18, 0
      %p149 = por %p147, %p148
      %p150 = scmp.ne.s32.totalorder %s138, %s139
      %p151 = scmp.eq.s32.totalorder %s19, 1
      %p152 = por %p150, %p151
      %p154 = scmp.ne.s32.totalorder %s139, %s153
      %p155 = scmp.eq.s32.totalorder %s19, 0
      %p156 = por %p154, %p155
      %s157 = ssub.s32 %s13, %s20
      %p158 = scmp.eq.s32.totalorder %s157, 0
      %s160 = sadd.s32 %s159, 1
      %s161 = scalar_select %p158, %s159, %s160
      %p164 = pneg %p158
      %p165 = scmp.eq.s32.totalorder %s13, 1
      %p166 = por %p164, %p165
      %p167 = scmp.ne.s32.totalorder %s159, %s162
      %p168 = scmp.eq.s32.totalorder %s13, 0
      %p169 = por %p167, %p168
      %p170 = scmp.ne.s32.totalorder %s159, %s162
      %p171 = scmp.eq.s32.totalorder %s18, 1
      %p172 = por %p170, %p171
      %p173 = scmp.ne.s32.totalorder %s162, %s163
      %p174 = scmp.eq.s32.totalorder %s18, 0
      %p175 = por %p173, %p174
      %p176 = scmp.ne.s32.totalorder %s162, %s163
      %p177 = scmp.eq.s32.totalorder %s19, 1
      %p178 = por %p176, %p177
      %p180 = scmp.ne.s32.totalorder %s163, %s179
      %p181 = scmp.eq.s32.totalorder %s19, 0
      %p182 = por %p180, %p181
      %p183 = scmp.le.s32.totalorder 1, %s13
      %p184 = scmp.lt.s32.totalorder %s13, 3
      %p185 = pnand %p183, %p184
      %p186 = pneg %p185
      // Predicated region
      $region9: #{full_forward.1} parent=5 // pred_check
        _
      $region10: #{full_forward.1} parent=5 // pred_check_branch
        %188 = sbr.rel (%p185) target = $region12
      $region11: #{full_forward.1} parent=5 // pred_region
        %s189 = ssub.s32 %s13, 1
        // Predicated region
        $region13: #{full_forward.1} parent=11 // pred_check
          %p190 = pneg %p86
        $region14: #{full_forward.1} parent=11 // pred_check_branch
          %192 = sbr.rel (%p190) target = $region16
        $region15: #{full_forward.1} parent=11 // pred_region
          _
        $region16: #{full_forward.1} parent=11 // pred_fallthru
          _
        // Predicated region
        $region17: #{full_forward.1} parent=11 // pred_check
          %p193 = pneg %p107
        $region18: #{full_forward.1} parent=11 // pred_check_branch
          %195 = sbr.rel (%p193) target = $region20
        $region19: #{full_forward.1} parent=11 // pred_region
          _
        $region20: #{full_forward.1} parent=11 // pred_fallthru
          _
        // Predicated region
        $region21: #{full_forward.1} parent=11 // pred_check
          %p196 = pneg %p128
        $region22: #{full_forward.1} parent=11 // pred_check_branch
          %198 = sbr.rel (%p196) target = $region24
        $region23: #{full_forward.1} parent=11 // pred_region
          _
        $region24: #{full_forward.1} parent=11 // pred_fallthru
          _
        // Predicated region
        $region25: #{full_forward.1} parent=11 // pred_check
          %p199 = pneg %p149
        $region26: #{full_forward.1} parent=11 // pred_check_branch
          %201 = sbr.rel (%p199) target = $region28
        $region27: #{full_forward.1} parent=11 // pred_region
          %203 = vsyncadd [#allocation4], 0
          %s205 = sshll.u32 %s5, 4
          %s206 = int_to_ptr.vmem [resolvable:$true] %s205
          %208 = dma.vmem_to_smem %s206, 16, [#allocation3], [#allocation4]
        $region28: #{full_forward.1} parent=11 // pred_fallthru
          _
      $region12: #{full_forward.1} parent=5 // pred_fallthru
        _
      %p209 = scmp.lt.s32.totalorder %s13, 2
      // Predicated region
      $region29: #{full_forward.1} parent=5 // pred_check
        %p210 = pneg %p209
      $region30: #{full_forward.1} parent=5 // pred_check_branch
        %212 = sbr.rel (%p210) target = $region32
      $region31: #{full_forward.1} parent=5 // pred_region
        // Predicated region
        $region33: #{full_forward.1} parent=31 // pred_check
          %p213 = pneg %p33
        $region34: #{full_forward.1} parent=31 // pred_check_branch
          %215 = sbr.rel (%p213) target = $region36
        $region35: #{full_forward.1} parent=31 // pred_region
          %s216 = sand.u32 %s23, 1
          %s217 = sand.u32 %s23, 1
          %s218 = smul.addr %s217, 64
          %s219 = scalar_lea.vmem [#allocation2], %s218
          %s220 = smul.u32 2, %s13
          %s221 = smul.addr %s220, 8
          %s222 = scalar_lea.vmem %s0, %s221
          // Predicated region
          $region37: #{full_forward.1} parent=35 // pred_check
            _
          $region38: #{full_forward.1} parent=35 // pred_check_branch
            %224 = sbr.rel (0) target = $region40
          $region39: #{full_forward.1} parent=35 // pred_region
            // Predicated region
            $region41: #{full_forward.1} parent=39 // pred_check
              _
            $region42: #{full_forward.1} parent=39 // pred_check_branch
              %226 = sbr.rel (0) target = $region44
            $region43: #{full_forward.1} parent=39 // pred_region
              loop: start=0, step=1, limit=1
              $region45: #{full_forward.1} parent=43 // loop_pre_header
                _
              $region46: #{full_forward.1} parent=43 // loop_header
                %s228 = sphi 0, %s232
                %p229 = scmp.ge.s32.totalorder %s228, 1
                %s233 = sphi %s222, %s222
                %s234 = sphi %s219, %s219
              $region47: #{full_forward.1} parent=43 // loop_header_branch
                %231 = sbr.rel (%p229) target = $region51
              $region48: #{full_forward.1} parent=43 // loop_body
                %v235 = vld [vmem:[%s233] sm:$0xff]
                %236 = vst [vmem:[%s234] sm:$0xff] %v235
                %v237 = vld [vmem:[%s233 + $0x8] sm:$0xff]
                %238 = vst [vmem:[%s234 + $0x8] sm:$0xff] %v237
                %v239 = vld [vmem:[%s233 + $0x20] sm:$0xff]
                %240 = vst [vmem:[%s234 + $0x10] sm:$0xff] %v239
                %v241 = vld [vmem:[%s233 + $0x28] sm:$0xff]
                %242 = vst [vmem:[%s234 + $0x18] sm:$0xff] %v241
                %v243 = vld [vmem:[%s233 + $0x40] sm:$0xff]
                %244 = vst [vmem:[%s234 + $0x20] sm:$0xff] %v243
                %v245 = vld [vmem:[%s233 + $0x48] sm:$0xff]
                %246 = vst [vmem:[%s234 + $0x28] sm:$0xff] %v245
                %v247 = vld [vmem:[%s233 + $0x60] sm:$0xff]
                %248 = vst [vmem:[%s234 + $0x30] sm:$0xff] %v247
                %v249 = vld [vmem:[%s233 + $0x68] sm:$0xff]
                %250 = vst [vmem:[%s234 + $0x38] sm:$0xff] %v249
              $region49: #{full_forward.1} parent=43 // loop_footer
                %s232 = sadd.s32 1, %s228
              $region50: #{full_forward.1} parent=43 // loop_footer_branch
                %227 = sbr.rel target = $region46
              $region51: #{full_forward.1} parent=43 // loop_exit
                _
            $region44: #{full_forward.1} parent=39 // pred_fallthru
              _
            // Predicated region
            $region52: #{full_forward.1} parent=39 // pred_check
              _
            $region53: #{full_forward.1} parent=39 // pred_check_branch
              %252 = sbr.rel target = $region55
            $region54: #{full_forward.1} parent=39 // pred_region
              _
            $region55: #{full_forward.1} parent=39 // pred_fallthru
              _
          $region40: #{full_forward.1} parent=35 // pred_fallthru
            _
          %253 = vnop
        $region36: #{full_forward.1} parent=31 // pred_fallthru
          _
        // Predicated region
        $region56: #{full_forward.1} parent=31 // pred_check
          %p254 = pneg %p59
        $region57: #{full_forward.1} parent=31 // pred_check_branch
          %256 = sbr.rel (%p254) target = $region59
        $region58: #{full_forward.1} parent=31 // pred_region
          %s257 = smul.u32 2, %s13
          %p258 = scmp.lt.s32.totalorder %s257, 3
          %s259 = scalar_select %p258, %s257, 3
          %s260 = scalar_lea.vmem %s1, %s259
          %s261 = smul.u32 2, %s13
        $region59: #{full_forward.1} parent=31 // pred_fallthru
          _
      $region32: #{full_forward.1} parent=5 // pred_fallthru
        _
      %p262 = scmp.le.s32.totalorder 1, %s13
      %p263 = scmp.lt.s32.totalorder %s13, 3
      %p264 = pnand %p262, %p263
      %p265 = pneg %p264
      // Predicated region
      $region60: #{full_forward.1} parent=5 // pred_check
        _
      $region61: #{full_forward.1} parent=5 // pred_check_branch
        %267 = sbr.rel (%p264) target = $region63
      $region62: #{full_forward.1} parent=5 // pred_region
        %s268 = ssub.s32 %s13, 1
        %s269 = sand.u32 %s26, 1
        %s270 = sand.u32 %s26, 1
        %s271 = smul.addr %s270, 64
        %s272 = scalar_lea.vmem [#allocation2], %s271
        // Predicated region
        $region64: #{full_forward.1} parent=62 // pred_check
          %p273 = pneg %p39
        $region65: #{full_forward.1} parent=62 // pred_check_branch
          %275 = sbr.rel (%p273) target = $region67
        $region66: #{full_forward.1} parent=62 // pred_region
          _
        $region67: #{full_forward.1} parent=62 // pred_fallthru
          _
        // Predicated region
        $region68: #{full_forward.1} parent=62 // pred_check
          %p276 = pneg %p149
        $region69: #{full_forward.1} parent=62 // pred_check_branch
          %278 = sbr.rel (%p276) target = $region71
        $region70: #{full_forward.1} parent=62 // pred_region
          %280 = dma.done [#allocation4], 16
        $region71: #{full_forward.1} parent=62 // pred_fallthru
          _
        %281 = sfence
        %s282 = sand.u32 %s26, 1
        %s283 = sand.u32 %s26, 1
        %s284 = smul.addr %s283, 64
        %s285 = scalar_lea.vmem [#allocation2], %s284
        %p286 = pneg %p39
        %p287 = pneg %p36
        %s288 = smul.u32 2, %s18
        %p289 = scmp.lt.s32.totalorder %s288, 3
        %s290 = scalar_select %p289, %s288, 3
        %s291 = scalar_lea.vmem %s1, %s290
        %p292 = pneg %p65
        %p293 = pneg %p62
        %p294 = pneg %p86
        %p295 = pneg %p83
        %p296 = pneg %p107
        %p297 = pneg %p104
        %p298 = pneg %p128
        %p299 = pneg %p125
        %p300 = pneg %p149
        %p301 = pneg %p146
        %p302 = pneg %p175
        %p303 = pneg %p172
        %s304 = smul.u32 2, %s18
        %p305 = scmp.lt.s32.totalorder %s304, 3
        %s306 = scalar_select %p305, %s304, 3
        %s307 = scalar_lea.vmem %s6, %s306
        %s308 = smul.u32 2, %s18
        %s309 = smul.u32 2, %s18
        %p310 = scmp.lt.s32.totalorder %s309, 3
        %s311 = scalar_select %p310, %s309, 3
        %s312 = scalar_lea.vmem %s1, %s311
        %s313 = smul.u32 2, %s18
        %s314 = smul.u32 2, %s18
        %p315 = scmp.lt.s32.totalorder %s314, 3
        %s316 = scalar_select %p315, %s314, 3
        %s317 = scalar_lea.vmem %s6, %s316
        %s318 = smul.u32 2, %s18
        %v319 = vld [vmem:[%s272] sm:$0xff]
        %v320 = vld [vmem:[%s272 + $0x8] sm:$0xff]
        %v321 = vld [vmem:[%s272 + $0x10] sm:$0xff]
        %v322 = vld [vmem:[%s272 + $0x18] sm:$0xff]
        %v323 = vld [vmem:[%s272 + $0x20] sm:$0xff]
        %v324 = vld [vmem:[%s272 + $0x28] sm:$0xff]
        %v325 = vld [vmem:[%s272 + $0x30] sm:$0xff]
        %v326 = vld [vmem:[%s272 + $0x38] sm:$0xff]
        %v327 = vld [vmem:[%s2] sm:$0xff]
        %v328 = vld [vmem:[%s2 + $0x8] sm:$0xff]
        %v329 = vld [vmem:[%s2 + $0x10] sm:$0xff]
        %v330 = vld [vmem:[%s2 + $0x18] sm:$0xff]
        %v331 = vld [vmem:[%s2 + $0x20] sm:$0xff]
        %v332 = vld [vmem:[%s2 + $0x28] sm:$0xff]
        %v333 = vld [vmem:[%s2 + $0x30] sm:$0xff]
        %v334 = vld [vmem:[%s2 + $0x38] sm:$0xff]
        %v335 = vld [vmem:[%s2 + $0x40] sm:$0xff]
        %v336 = vld [vmem:[%s2 + $0x48] sm:$0xff]
        %v337 = vld [vmem:[%s2 + $0x50] sm:$0xff]
        %v338 = vld [vmem:[%s2 + $0x58] sm:$0xff]
        %v339 = vld [vmem:[%s2 + $0x60] sm:$0xff]
        %v340 = vld [vmem:[%s2 + $0x68] sm:$0xff]
        %v341 = vld [vmem:[%s2 + $0x70] sm:$0xff]
        %v342 = vld [vmem:[%s2 + $0x78] sm:$0xff]
        %v343 = vld [vmem:[%s3] sm:$0xff]
        %v344 = vld [vmem:[%s3 + $0x8] sm:$0xff]
        %v345 = vld [vmem:[%s3 + $0x10] sm:$0xff]
        %v346 = vld [vmem:[%s3 + $0x18] sm:$0xff]
        %v347 = vld [vmem:[%s3 + $0x20] sm:$0xff]
        %v348 = vld [vmem:[%s3 + $0x28] sm:$0xff]
        %v349 = vld [vmem:[%s3 + $0x30] sm:$0xff]
        %v350 = vld [vmem:[%s3 + $0x38] sm:$0xff]
        %v351 = vld [vmem:[%s3 + $0x40] sm:$0xff]
        %v352 = vld [vmem:[%s3 + $0x48] sm:$0xff]
        %v353 = vld [vmem:[%s3 + $0x50] sm:$0xff]
        %v354 = vld [vmem:[%s3 + $0x58] sm:$0xff]
        %v355 = vld [vmem:[%s3 + $0x60] sm:$0xff]
        %v356 = vld [vmem:[%s3 + $0x68] sm:$0xff]
        %v357 = vld [vmem:[%s3 + $0x70] sm:$0xff]
        %v358 = vld [vmem:[%s3 + $0x78] sm:$0xff]
        %360 = vset.pattern.permute.xlu0 0
        %361 = vperm.xlu0 %360, %v343
        %v362 = vpop.permute.xlu0 %361
        %365 = vset.pattern.permute.xlu0 0
        %366 = vperm.xlu0 %365, %v344
        %v367 = vpop.permute.xlu0 %366
        %370 = vset.pattern.permute.xlu0 0
        %371 = vperm.xlu0 %370, %v345
        %v372 = vpop.permute.xlu0 %371
        %375 = vset.pattern.permute.xlu0 0
        %376 = vperm.xlu0 %375, %v346
        %v377 = vpop.permute.xlu0 %376
        %380 = vset.pattern.permute.xlu0 0
        %381 = vperm.xlu0 %380, %v347
        %v382 = vpop.permute.xlu0 %381
        %385 = vset.pattern.permute.xlu0 0
        %386 = vperm.xlu0 %385, %v348
        %v387 = vpop.permute.xlu0 %386
        %390 = vset.pattern.permute.xlu0 0
        %391 = vperm.xlu0 %390, %v349
        %v392 = vpop.permute.xlu0 %391
        %395 = vset.pattern.permute.xlu0 0
        %396 = vperm.xlu0 %395, %v350
        %v397 = vpop.permute.xlu0 %396
        %400 = vset.pattern.permute.xlu0 0
        %401 = vperm.xlu0 %400, %v351
        %v402 = vpop.permute.xlu0 %401
        %405 = vset.pattern.permute.xlu0 0
        %406 = vperm.xlu0 %405, %v352
        %v407 = vpop.permute.xlu0 %406
        %410 = vset.pattern.permute.xlu0 0
        %411 = vperm.xlu0 %410, %v353
        %v412 = vpop.permute.xlu0 %411
        %415 = vset.pattern.permute.xlu0 0
        %416 = vperm.xlu0 %415, %v354
        %v417 = vpop.permute.xlu0 %416
        %420 = vset.pattern.permute.xlu0 0
        %421 = vperm.xlu0 %420, %v355
        %v422 = vpop.permute.xlu0 %421
        %425 = vset.pattern.permute.xlu0 0
        %426 = vperm.xlu0 %425, %v356
        %v427 = vpop.permute.xlu0 %426
        %430 = vset.pattern.permute.xlu0 0
        %431 = vperm.xlu0 %430, %v357
        %v432 = vpop.permute.xlu0 %431
        %435 = vset.pattern.permute.xlu0 0
        %436 = vperm.xlu0 %435, %v358
        %v437 = vpop.permute.xlu0 %436
        %439 = vmatpush.msra.mxu0 0.0
        %440 = vmatpush.msra.mxu0 0.0
        %441 = vmatpush.msra.mxu0 0.0
        %442 = vmatpush.msra.mxu0 0.0
        %443 = vmatpush.msra.mxu0 0.0
        %444 = vmatpush.msra.mxu0 0.0
        %445 = vmatpush.msra.mxu0 0.0
        %446 = vmatpush.msra.mxu0 0.0
        %447 = vmatpush.msra.mxu0 0.0
        %448 = vmatpush.msra.mxu0 0.0
        %449 = vmatpush.msra.mxu0 0.0
        %450 = vmatpush.msra.mxu0 0.0
        %451 = vmatpush.msra.mxu0 %v325
        %452 = vmatpush.msra.mxu0 %v323
        %453 = vmatpush.msra.mxu0 %v321
        %454 = vmatpush.msra.mxu0 %v319
        %455 = vmatmul.f32.gmra.mxu0 %v327
        %v456 = vpop.f32.mrf.mxu0
        %v457 = vadd.f32 %v362, %v456
        %458 = vmatmul.f32.gmra.mxu0 %v328
        %v459 = vpop.f32.mrf.mxu0
        %v460 = vadd.f32 %v367, %v459
        %461 = vmatmul.f32.gmra.mxu0 %v329
        %v462 = vpop.f32.mrf.mxu0
        %v463 = vadd.f32 %v372, %v462
        %464 = vmatmul.f32.gmra.mxu0 %v330
        %v465 = vpop.f32.mrf.mxu0
        %v466 = vadd.f32 %v377, %v465
        %467 = vmatmul.f32.gmra.mxu0 %v331
        %v468 = vpop.f32.mrf.mxu0
        %v469 = vadd.f32 %v382, %v468
        %470 = vmatmul.f32.gmra.mxu0 %v332
        %v471 = vpop.f32.mrf.mxu0
        %v472 = vadd.f32 %v387, %v471
        %473 = vmatmul.f32.gmra.mxu0 %v333
        %v474 = vpop.f32.mrf.mxu0
        %v475 = vadd.f32 %v392, %v474
        %476 = vmatmul.f32.gmra.mxu0 %v334
        %v477 = vpop.f32.mrf.mxu0
        %v478 = vadd.f32 %v397, %v477
        %479 = vmatmul.f32.gmra.mxu0 %v335
        %v480 = vpop.f32.mrf.mxu0
        %v481 = vadd.f32 %v402, %v480
        %482 = vmatmul.f32.gmra.mxu0 %v336
        %v483 = vpop.f32.mrf.mxu0
        %v484 = vadd.f32 %v407, %v483
        %485 = vmatmul.f32.gmra.mxu0 %v337
        %v486 = vpop.f32.mrf.mxu0
        %v487 = vadd.f32 %v412, %v486
        %488 = vmatmul.f32.gmra.mxu0 %v338
        %v489 = vpop.f32.mrf.mxu0
        %v490 = vadd.f32 %v417, %v489
        %491 = vmatmul.f32.gmra.mxu0 %v339
        %v492 = vpop.f32.mrf.mxu0
        %v493 = vadd.f32 %v422, %v492
        %494 = vmatmul.f32.gmra.mxu0 %v340
        %v495 = vpop.f32.mrf.mxu0
        %v496 = vadd.f32 %v427, %v495
        %497 = vmatmul.f32.gmra.mxu0 %v341
        %v498 = vpop.f32.mrf.mxu0
        %v499 = vadd.f32 %v432, %v498
        %500 = vmatmul.f32.gmra.mxu0 %v342
        %v501 = vpop.f32.mrf.mxu0
        %v502 = vadd.f32 %v437, %v501
        %503 = vdwg.mxu0
        %504 = vmatpush.msra.mxu0 0.0
        %505 = vmatpush.msra.mxu0 0.0
        %506 = vmatpush.msra.mxu0 0.0
        %507 = vmatpush.msra.mxu0 0.0
        %508 = vmatpush.msra.mxu0 0.0
        %509 = vmatpush.msra.mxu0 0.0
        %510 = vmatpush.msra.mxu0 0.0
        %511 = vmatpush.msra.mxu0 0.0
        %512 = vmatpush.msra.mxu0 0.0
        %513 = vmatpush.msra.mxu0 0.0
        %514 = vmatpush.msra.mxu0 0.0
        %515 = vmatpush.msra.mxu0 0.0
        %516 = vmatpush.msra.mxu0 %v326
        %517 = vmatpush.msra.mxu0 %v324
        %518 = vmatpush.msra.mxu0 %v322
        %519 = vmatpush.msra.mxu0 %v320
        %520 = vmatmul.f32.gmra.mxu0 %v327
        %v521 = vpop.f32.mrf.mxu0
        %v522 = vadd.f32 %v362, %v521
        %523 = vmatmul.f32.gmra.mxu0 %v328
        %v524 = vpop.f32.mrf.mxu0
        %v525 = vadd.f32 %v367, %v524
        %526 = vmatmul.f32.gmra.mxu0 %v329
        %v527 = vpop.f32.mrf.mxu0
        %v528 = vadd.f32 %v372, %v527
        %529 = vmatmul.f32.gmra.mxu0 %v330
        %v530 = vpop.f32.mrf.mxu0
        %v531 = vadd.f32 %v377, %v530
        %532 = vmatmul.f32.gmra.mxu0 %v331
        %v533 = vpop.f32.mrf.mxu0
        %v534 = vadd.f32 %v382, %v533
        %535 = vmatmul.f32.gmra.mxu0 %v332
        %v536 = vpop.f32.mrf.mxu0
        %v537 = vadd.f32 %v387, %v536
        %538 = vmatmul.f32.gmra.mxu0 %v333
        %v539 = vpop.f32.mrf.mxu0
        %v540 = vadd.f32 %v392, %v539
        %541 = vmatmul.f32.gmra.mxu0 %v334
        %v542 = vpop.f32.mrf.mxu0
        %v543 = vadd.f32 %v397, %v542
        %544 = vmatmul.f32.gmra.mxu0 %v335
        %v545 = vpop.f32.mrf.mxu0
        %v546 = vadd.f32 %v402, %v545
        %547 = vmatmul.f32.gmra.mxu0 %v336
        %v548 = vpop.f32.mrf.mxu0
        %v549 = vadd.f32 %v407, %v548
        %550 = vmatmul.f32.gmra.mxu0 %v337
        %v551 = vpop.f32.mrf.mxu0
        %v552 = vadd.f32 %v412, %v551
        %553 = vmatmul.f32.gmra.mxu0 %v338
        %v554 = vpop.f32.mrf.mxu0
        %v555 = vadd.f32 %v417, %v554
        %556 = vmatmul.f32.gmra.mxu0 %v339
        %v557 = vpop.f32.mrf.mxu0
        %v558 = vadd.f32 %v422, %v557
        %559 = vmatmul.f32.gmra.mxu0 %v340
        %v560 = vpop.f32.mrf.mxu0
        %v561 = vadd.f32 %v427, %v560
        %562 = vmatmul.f32.gmra.mxu0 %v341
        %v563 = vpop.f32.mrf.mxu0
        %v564 = vadd.f32 %v432, %v563
        %565 = vmatmul.f32.gmra.mxu0 %v342
        %v566 = vpop.f32.mrf.mxu0
        %v567 = vadd.f32 %v437, %v566
        %568 = vdwg.mxu0
        %v569 = vmax.f32 %v457, 0.0
        %v570 = vmax.f32 %v522, 0.0
        %v571 = vmax.f32 %v460, 0.0
        %v572 = vmax.f32 %v525, 0.0
        %v573 = vmax.f32 %v463, 0.0
        %v574 = vmax.f32 %v528, 0.0
        %v575 = vmax.f32 %v466, 0.0
        %v576 = vmax.f32 %v531, 0.0
        %v577 = vmax.f32 %v469, 0.0
        %v578 = vmax.f32 %v534, 0.0
        %v579 = vmax.f32 %v472, 0.0
        %v580 = vmax.f32 %v537, 0.0
        %v581 = vmax.f32 %v475, 0.0
        %v582 = vmax.f32 %v540, 0.0
        %v583 = vmax.f32 %v478, 0.0
        %v584 = vmax.f32 %v543, 0.0
        %v585 = vmax.f32 %v481, 0.0
        %v586 = vmax.f32 %v546, 0.0
        %v587 = vmax.f32 %v484, 0.0
        %v588 = vmax.f32 %v549, 0.0
        %v589 = vmax.f32 %v487, 0.0
        %v590 = vmax.f32 %v552, 0.0
        %v591 = vmax.f32 %v490, 0.0
        %v592 = vmax.f32 %v555, 0.0
        %v593 = vmax.f32 %v493, 0.0
        %v594 = vmax.f32 %v558, 0.0
        %v595 = vmax.f32 %v496, 0.0
        %v596 = vmax.f32 %v561, 0.0
        %v597 = vmax.f32 %v499, 0.0
        %v598 = vmax.f32 %v564, 0.0
        %v599 = vmax.f32 %v502, 0.0
        %v600 = vmax.f32 %v567, 0.0
        %s601 = scalar_lea.vmem %s2, 128
        %v602 = vld [vmem:[%s601] sm:$0xff]
        %v603 = vld [vmem:[%s601 + $0x8] sm:$0xff]
        %v604 = vld [vmem:[%s601 + $0x10] sm:$0xff]
        %v605 = vld [vmem:[%s601 + $0x18] sm:$0xff]
        %v606 = vld [vmem:[%s601 + $0x20] sm:$0xff]
        %v607 = vld [vmem:[%s601 + $0x28] sm:$0xff]
        %v608 = vld [vmem:[%s601 + $0x30] sm:$0xff]
        %v609 = vld [vmem:[%s601 + $0x38] sm:$0xff]
        %v610 = vld [vmem:[%s601 + $0x40] sm:$0xff]
        %v611 = vld [vmem:[%s601 + $0x48] sm:$0xff]
        %v612 = vld [vmem:[%s601 + $0x50] sm:$0xff]
        %v613 = vld [vmem:[%s601 + $0x58] sm:$0xff]
        %v614 = vld [vmem:[%s601 + $0x60] sm:$0xff]
        %v615 = vld [vmem:[%s601 + $0x68] sm:$0xff]
        %v616 = vld [vmem:[%s601 + $0x70] sm:$0xff]
        %v617 = vld [vmem:[%s601 + $0x78] sm:$0xff]
        %s618 = scalar_lea.vmem %s3, 128
        %v619 = vld [vmem:[%s618] sm:$0xff]
        %v620 = vld [vmem:[%s618 + $0x8] sm:$0xff]
        %v621 = vld [vmem:[%s618 + $0x10] sm:$0xff]
        %v622 = vld [vmem:[%s618 + $0x18] sm:$0xff]
        %v623 = vld [vmem:[%s618 + $0x20] sm:$0xff]
        %v624 = vld [vmem:[%s618 + $0x28] sm:$0xff]
        %v625 = vld [vmem:[%s618 + $0x30] sm:$0xff]
        %v626 = vld [vmem:[%s618 + $0x38] sm:$0xff]
        %v627 = vld [vmem:[%s618 + $0x40] sm:$0xff]
        %v628 = vld [vmem:[%s618 + $0x48] sm:$0xff]
        %v629 = vld [vmem:[%s618 + $0x50] sm:$0xff]
        %v630 = vld [vmem:[%s618 + $0x58] sm:$0xff]
        %v631 = vld [vmem:[%s618 + $0x60] sm:$0xff]
        %v632 = vld [vmem:[%s618 + $0x68] sm:$0xff]
        %v633 = vld [vmem:[%s618 + $0x70] sm:$0xff]
        %v634 = vld [vmem:[%s618 + $0x78] sm:$0xff]
        %636 = vset.pattern.permute.xlu0 0
        %637 = vperm.xlu0 %636, %v619
        %v638 = vpop.permute.xlu0 %637
        %641 = vset.pattern.permute.xlu0 0
        %642 = vperm.xlu0 %641, %v620
        %v643 = vpop.permute.xlu0 %642
        %646 = vset.pattern.permute.xlu0 0
        %647 = vperm.xlu0 %646, %v621
        %v648 = vpop.permute.xlu0 %647
        %651 = vset.pattern.permute.xlu0 0
        %652 = vperm.xlu0 %651, %v622
        %v653 = vpop.permute.xlu0 %652
        %656 = vset.pattern.permute.xlu0 0
        %657 = vperm.xlu0 %656, %v623
        %v658 = vpop.permute.xlu0 %657
        %661 = vset.pattern.permute.xlu0 0
        %662 = vperm.xlu0 %661, %v624
        %v663 = vpop.permute.xlu0 %662
        %666 = vset.pattern.permute.xlu0 0
        %667 = vperm.xlu0 %666, %v625
        %v668 = vpop.permute.xlu0 %667
        %671 = vset.pattern.permute.xlu0 0
        %672 = vperm.xlu0 %671, %v626
        %v673 = vpop.permute.xlu0 %672
        %676 = vset.pattern.permute.xlu0 0
        %677 = vperm.xlu0 %676, %v627
        %v678 = vpop.permute.xlu0 %677
        %681 = vset.pattern.permute.xlu0 0
        %682 = vperm.xlu0 %681, %v628
        %v683 = vpop.permute.xlu0 %682
        %686 = vset.pattern.permute.xlu0 0
        %687 = vperm.xlu0 %686, %v629
        %v688 = vpop.permute.xlu0 %687
        %691 = vset.pattern.permute.xlu0 0
        %692 = vperm.xlu0 %691, %v630
        %v693 = vpop.permute.xlu0 %692
        %696 = vset.pattern.permute.xlu0 0
        %697 = vperm.xlu0 %696, %v631
        %v698 = vpop.permute.xlu0 %697
        %701 = vset.pattern.permute.xlu0 0
        %702 = vperm.xlu0 %701, %v632
        %v703 = vpop.permute.xlu0 %702
        %706 = vset.pattern.permute.xlu0 0
        %707 = vperm.xlu0 %706, %v633
        %v708 = vpop.permute.xlu0 %707
        %711 = vset.pattern.permute.xlu0 0
        %712 = vperm.xlu0 %711, %v634
        %v713 = vpop.permute.xlu0 %712
        %715 = vmatpush.msra.mxu0 %v599
        %716 = vmatpush.msra.mxu0 %v597
        %717 = vmatpush.msra.mxu0 %v595
        %718 = vmatpush.msra.mxu0 %v593
        %719 = vmatpush.msra.mxu0 %v591
        %720 = vmatpush.msra.mxu0 %v589
        %721 = vmatpush.msra.mxu0 %v587
        %722 = vmatpush.msra.mxu0 %v585
        %723 = vmatpush.msra.mxu0 %v583
        %724 = vmatpush.msra.mxu0 %v581
        %725 = vmatpush.msra.mxu0 %v579
        %726 = vmatpush.msra.mxu0 %v577
        %727 = vmatpush.msra.mxu0 %v575
        %728 = vmatpush.msra.mxu0 %v573
        %729 = vmatpush.msra.mxu0 %v571
        %730 = vmatpush.msra.mxu0 %v569
        %731 = vmatmul.f32.gmra.mxu0 %v602
        %v732 = vpop.f32.mrf.mxu0
        %v733 = vadd.f32 %v638, %v732
        %734 = vmatmul.f32.gmra.mxu0 %v603
        %v735 = vpop.f32.mrf.mxu0
        %v736 = vadd.f32 %v643, %v735
        %737 = vmatmul.f32.gmra.mxu0 %v604
        %v738 = vpop.f32.mrf.mxu0
        %v739 = vadd.f32 %v648, %v738
        %740 = vmatmul.f32.gmra.mxu0 %v605
        %v741 = vpop.f32.mrf.mxu0
        %v742 = vadd.f32 %v653, %v741
        %743 = vmatmul.f32.gmra.mxu0 %v606
        %v744 = vpop.f32.mrf.mxu0
        %v745 = vadd.f32 %v658, %v744
        %746 = vmatmul.f32.gmra.mxu0 %v607
        %v747 = vpop.f32.mrf.mxu0
        %v748 = vadd.f32 %v663, %v747
        %749 = vmatmul.f32.gmra.mxu0 %v608
        %v750 = vpop.f32.mrf.mxu0
        %v751 = vadd.f32 %v668, %v750
        %752 = vmatmul.f32.gmra.mxu0 %v609
        %v753 = vpop.f32.mrf.mxu0
        %v754 = vadd.f32 %v673, %v753
        %755 = vmatmul.f32.gmra.mxu0 %v610
        %v756 = vpop.f32.mrf.mxu0
        %v757 = vadd.f32 %v678, %v756
        %758 = vmatmul.f32.gmra.mxu0 %v611
        %v759 = vpop.f32.mrf.mxu0
        %v760 = vadd.f32 %v683, %v759
        %761 = vmatmul.f32.gmra.mxu0 %v612
        %v762 = vpop.f32.mrf.mxu0
        %v763 = vadd.f32 %v688, %v762
        %764 = vmatmul.f32.gmra.mxu0 %v613
        %v765 = vpop.f32.mrf.mxu0
        %v766 = vadd.f32 %v693, %v765
        %767 = vmatmul.f32.gmra.mxu0 %v614
        %v768 = vpop.f32.mrf.mxu0
        %v769 = vadd.f32 %v698, %v768
        %770 = vmatmul.f32.gmra.mxu0 %v615
        %v771 = vpop.f32.mrf.mxu0
        %v772 = vadd.f32 %v703, %v771
        %773 = vmatmul.f32.gmra.mxu0 %v616
        %v774 = vpop.f32.mrf.mxu0
        %v775 = vadd.f32 %v708, %v774
        %776 = vmatmul.f32.gmra.mxu0 %v617
        %v777 = vpop.f32.mrf.mxu0
        %v778 = vadd.f32 %v713, %v777
        %779 = vdwg.mxu0
        %780 = vmatpush.msra.mxu0 %v600
        %781 = vmatpush.msra.mxu0 %v598
        %782 = vmatpush.msra.mxu0 %v596
        %783 = vmatpush.msra.mxu0 %v594
        %784 = vmatpush.msra.mxu0 %v592
        %785 = vmatpush.msra.mxu0 %v590
        %786 = vmatpush.msra.mxu0 %v588
        %787 = vmatpush.msra.mxu0 %v586
        %788 = vmatpush.msra.mxu0 %v584
        %789 = vmatpush.msra.mxu0 %v582
        %790 = vmatpush.msra.mxu0 %v580
        %791 = vmatpush.msra.mxu0 %v578
        %792 = vmatpush.msra.mxu0 %v576
        %793 = vmatpush.msra.mxu0 %v574
        %794 = vmatpush.msra.mxu0 %v572
        %795 = vmatpush.msra.mxu0 %v570
        %796 = vmatmul.f32.gmra.mxu0 %v602
        %v797 = vpop.f32.mrf.mxu0
        %v798 = vadd.f32 %v638, %v797
        %799 = vmatmul.f32.gmra.mxu0 %v603
        %v800 = vpop.f32.mrf.mxu0
        %v801 = vadd.f32 %v643, %v800
        %802 = vmatmul.f32.gmra.mxu0 %v604
        %v803 = vpop.f32.mrf.mxu0
        %v804 = vadd.f32 %v648, %v803
        %805 = vmatmul.f32.gmra.mxu0 %v605
        %v806 = vpop.f32.mrf.mxu0
        %v807 = vadd.f32 %v653, %v806
        %808 = vmatmul.f32.gmra.mxu0 %v606
        %v809 = vpop.f32.mrf.mxu0
        %v810 = vadd.f32 %v658, %v809
        %811 = vmatmul.f32.gmra.mxu0 %v607
        %v812 = vpop.f32.mrf.mxu0
        %v813 = vadd.f32 %v663, %v812
        %814 = vmatmul.f32.gmra.mxu0 %v608
        %v815 = vpop.f32.mrf.mxu0
        %v816 = vadd.f32 %v668, %v815
        %817 = vmatmul.f32.gmra.mxu0 %v609
        %v818 = vpop.f32.mrf.mxu0
        %v819 = vadd.f32 %v673, %v818
        %820 = vmatmul.f32.gmra.mxu0 %v610
        %v821 = vpop.f32.mrf.mxu0
        %v822 = vadd.f32 %v678, %v821
        %823 = vmatmul.f32.gmra.mxu0 %v611
        %v824 = vpop.f32.mrf.mxu0
        %v825 = vadd.f32 %v683, %v824
        %826 = vmatmul.f32.gmra.mxu0 %v612
        %v827 = vpop.f32.mrf.mxu0
        %v828 = vadd.f32 %v688, %v827
        %829 = vmatmul.f32.gmra.mxu0 %v613
        %v830 = vpop.f32.mrf.mxu0
        %v831 = vadd.f32 %v693, %v830
        %832 = vmatmul.f32.gmra.mxu0 %v614
        %v833 = vpop.f32.mrf.mxu0
        %v834 = vadd.f32 %v698, %v833
        %835 = vmatmul.f32.gmra.mxu0 %v615
        %v836 = vpop.f32.mrf.mxu0
        %v837 = vadd.f32 %v703, %v836
        %838 = vmatmul.f32.gmra.mxu0 %v616
        %v839 = vpop.f32.mrf.mxu0
        %v840 = vadd.f32 %v708, %v839
        %841 = vmatmul.f32.gmra.mxu0 %v617
        %v842 = vpop.f32.mrf.mxu0
        %v843 = vadd.f32 %v713, %v842
        %844 = vdwg.mxu0
        %v845 = vmax.f32 %v733, 0.0
        %v846 = vmax.f32 %v798, 0.0
        %v847 = vmax.f32 %v736, 0.0
        %v848 = vmax.f32 %v801, 0.0
        %v849 = vmax.f32 %v739, 0.0
        %v850 = vmax.f32 %v804, 0.0
        %v851 = vmax.f32 %v742, 0.0
        %v852 = vmax.f32 %v807, 0.0
        %v853 = vmax.f32 %v745, 0.0
        %v854 = vmax.f32 %v810, 0.0
        %v855 = vmax.f32 %v748, 0.0
        %v856 = vmax.f32 %v813, 0.0
        %v857 = vmax.f32 %v751, 0.0
        %v858 = vmax.f32 %v816, 0.0
        %v859 = vmax.f32 %v754, 0.0
        %v860 = vmax.f32 %v819, 0.0
        %v861 = vmax.f32 %v757, 0.0
        %v862 = vmax.f32 %v822, 0.0
        %v863 = vmax.f32 %v760, 0.0
        %v864 = vmax.f32 %v825, 0.0
        %v865 = vmax.f32 %v763, 0.0
        %v866 = vmax.f32 %v828, 0.0
        %v867 = vmax.f32 %v766, 0.0
        %v868 = vmax.f32 %v831, 0.0
        %v869 = vmax.f32 %v769, 0.0
        %v870 = vmax.f32 %v834, 0.0
        %v871 = vmax.f32 %v772, 0.0
        %v872 = vmax.f32 %v837, 0.0
        %v873 = vmax.f32 %v775, 0.0
        %v874 = vmax.f32 %v840, 0.0
        %v875 = vmax.f32 %v778, 0.0
        %v876 = vmax.f32 %v843, 0.0
        %s877 = scalar_lea.vmem %s2, 256
        %v878 = vld [vmem:[%s877] sm:$0xff]
        %v879 = vld [vmem:[%s877 + $0x8] sm:$0xff]
        %v880 = vld [vmem:[%s877 + $0x10] sm:$0xff]
        %v881 = vld [vmem:[%s877 + $0x18] sm:$0xff]
        %v882 = vld [vmem:[%s877 + $0x20] sm:$0xff]
        %v883 = vld [vmem:[%s877 + $0x28] sm:$0xff]
        %v884 = vld [vmem:[%s877 + $0x30] sm:$0xff]
        %v885 = vld [vmem:[%s877 + $0x38] sm:$0xff]
        %v886 = vld [vmem:[%s877 + $0x40] sm:$0xff]
        %v887 = vld [vmem:[%s877 + $0x48] sm:$0xff]
        %v888 = vld [vmem:[%s877 + $0x50] sm:$0xff]
        %v889 = vld [vmem:[%s877 + $0x58] sm:$0xff]
        %v890 = vld [vmem:[%s877 + $0x60] sm:$0xff]
        %v891 = vld [vmem:[%s877 + $0x68] sm:$0xff]
        %v892 = vld [vmem:[%s877 + $0x70] sm:$0xff]
        %v893 = vld [vmem:[%s877 + $0x78] sm:$0xff]
        %s894 = scalar_lea.vmem %s3, 256
        %v895 = vld [vmem:[%s894] sm:$0xff]
        %v896 = vld [vmem:[%s894 + $0x8] sm:$0xff]
        %v897 = vld [vmem:[%s894 + $0x10] sm:$0xff]
        %v898 = vld [vmem:[%s894 + $0x18] sm:$0xff]
        %v899 = vld [vmem:[%s894 + $0x20] sm:$0xff]
        %v900 = vld [vmem:[%s894 + $0x28] sm:$0xff]
        %v901 = vld [vmem:[%s894 + $0x30] sm:$0xff]
        %v902 = vld [vmem:[%s894 + $0x38] sm:$0xff]
        %v903 = vld [vmem:[%s894 + $0x40] sm:$0xff]
        %v904 = vld [vmem:[%s894 + $0x48] sm:$0xff]
        %v905 = vld [vmem:[%s894 + $0x50] sm:$0xff]
        %v906 = vld [vmem:[%s894 + $0x58] sm:$0xff]
        %v907 = vld [vmem:[%s894 + $0x60] sm:$0xff]
        %v908 = vld [vmem:[%s894 + $0x68] sm:$0xff]
        %v909 = vld [vmem:[%s894 + $0x70] sm:$0xff]
        %v910 = vld [vmem:[%s894 + $0x78] sm:$0xff]
        %912 = vset.pattern.permute.xlu0 0
        %913 = vperm.xlu0 %912, %v895
        %v914 = vpop.permute.xlu0 %913
        %917 = vset.pattern.permute.xlu0 0
        %918 = vperm.xlu0 %917, %v896
        %v919 = vpop.permute.xlu0 %918
        %922 = vset.pattern.permute.xlu0 0
        %923 = vperm.xlu0 %922, %v897
        %v924 = vpop.permute.xlu0 %923
        %927 = vset.pattern.permute.xlu0 0
        %928 = vperm.xlu0 %927, %v898
        %v929 = vpop.permute.xlu0 %928
        %932 = vset.pattern.permute.xlu0 0
        %933 = vperm.xlu0 %932, %v899
        %v934 = vpop.permute.xlu0 %933
        %937 = vset.pattern.permute.xlu0 0
        %938 = vperm.xlu0 %937, %v900
        %v939 = vpop.permute.xlu0 %938
        %942 = vset.pattern.permute.xlu0 0
        %943 = vperm.xlu0 %942, %v901
        %v944 = vpop.permute.xlu0 %943
        %947 = vset.pattern.permute.xlu0 0
        %948 = vperm.xlu0 %947, %v902
        %v949 = vpop.permute.xlu0 %948
        %952 = vset.pattern.permute.xlu0 0
        %953 = vperm.xlu0 %952, %v903
        %v954 = vpop.permute.xlu0 %953
        %957 = vset.pattern.permute.xlu0 0
        %958 = vperm.xlu0 %957, %v904
        %v959 = vpop.permute.xlu0 %958
        %962 = vset.pattern.permute.xlu0 0
        %963 = vperm.xlu0 %962, %v905
        %v964 = vpop.permute.xlu0 %963
        %967 = vset.pattern.permute.xlu0 0
        %968 = vperm.xlu0 %967, %v906
        %v969 = vpop.permute.xlu0 %968
        %972 = vset.pattern.permute.xlu0 0
        %973 = vperm.xlu0 %972, %v907
        %v974 = vpop.permute.xlu0 %973
        %977 = vset.pattern.permute.xlu0 0
        %978 = vperm.xlu0 %977, %v908
        %v979 = vpop.permute.xlu0 %978
        %982 = vset.pattern.permute.xlu0 0
        %983 = vperm.xlu0 %982, %v909
        %v984 = vpop.permute.xlu0 %983
        %987 = vset.pattern.permute.xlu0 0
        %988 = vperm.xlu0 %987, %v910
        %v989 = vpop.permute.xlu0 %988
        %991 = vmatpush.msra.mxu0 %v875
        %992 = vmatpush.msra.mxu0 %v873
        %993 = vmatpush.msra.mxu0 %v871
        %994 = vmatpush.msra.mxu0 %v869
        %995 = vmatpush.msra.mxu0 %v867
        %996 = vmatpush.msra.mxu0 %v865
        %997 = vmatpush.msra.mxu0 %v863
        %998 = vmatpush.msra.mxu0 %v861
        %999 = vmatpush.msra.mxu0 %v859
        %1000 = vmatpush.msra.mxu0 %v857
        %1001 = vmatpush.msra.mxu0 %v855
        %1002 = vmatpush.msra.mxu0 %v853
        %1003 = vmatpush.msra.mxu0 %v851
        %1004 = vmatpush.msra.mxu0 %v849
        %1005 = vmatpush.msra.mxu0 %v847
        %1006 = vmatpush.msra.mxu0 %v845
        %1007 = vmatmul.f32.gmra.mxu0 %v878
        %v1008 = vpop.f32.mrf.mxu0
        %v1009 = vadd.f32 %v914, %v1008
        %1010 = vmatmul.f32.gmra.mxu0 %v879
        %v1011 = vpop.f32.mrf.mxu0
        %v1012 = vadd.f32 %v919, %v1011
        %1013 = vmatmul.f32.gmra.mxu0 %v880
        %v1014 = vpop.f32.mrf.mxu0
        %v1015 = vadd.f32 %v924, %v1014
        %1016 = vmatmul.f32.gmra.mxu0 %v881
        %v1017 = vpop.f32.mrf.mxu0
        %v1018 = vadd.f32 %v929, %v1017
        %1019 = vmatmul.f32.gmra.mxu0 %v882
        %v1020 = vpop.f32.mrf.mxu0
        %v1021 = vadd.f32 %v934, %v1020
        %1022 = vmatmul.f32.gmra.mxu0 %v883
        %v1023 = vpop.f32.mrf.mxu0
        %v1024 = vadd.f32 %v939, %v1023
        %1025 = vmatmul.f32.gmra.mxu0 %v884
        %v1026 = vpop.f32.mrf.mxu0
        %v1027 = vadd.f32 %v944, %v1026
        %1028 = vmatmul.f32.gmra.mxu0 %v885
        %v1029 = vpop.f32.mrf.mxu0
        %v1030 = vadd.f32 %v949, %v1029
        %1031 = vmatmul.f32.gmra.mxu0 %v886
        %v1032 = vpop.f32.mrf.mxu0
        %v1033 = vadd.f32 %v954, %v1032
        %1034 = vmatmul.f32.gmra.mxu0 %v887
        %v1035 = vpop.f32.mrf.mxu0
        %v1036 = vadd.f32 %v959, %v1035
        %1037 = vmatmul.f32.gmra.mxu0 %v888
        %v1038 = vpop.f32.mrf.mxu0
        %v1039 = vadd.f32 %v964, %v1038
        %1040 = vmatmul.f32.gmra.mxu0 %v889
        %v1041 = vpop.f32.mrf.mxu0
        %v1042 = vadd.f32 %v969, %v1041
        %1043 = vmatmul.f32.gmra.mxu0 %v890
        %v1044 = vpop.f32.mrf.mxu0
        %v1045 = vadd.f32 %v974, %v1044
        %1046 = vmatmul.f32.gmra.mxu0 %v891
        %v1047 = vpop.f32.mrf.mxu0
        %v1048 = vadd.f32 %v979, %v1047
        %1049 = vmatmul.f32.gmra.mxu0 %v892
        %v1050 = vpop.f32.mrf.mxu0
        %v1051 = vadd.f32 %v984, %v1050
        %1052 = vmatmul.f32.gmra.mxu0 %v893
        %v1053 = vpop.f32.mrf.mxu0
        %v1054 = vadd.f32 %v989, %v1053
        %1055 = vdwg.mxu0
        %1056 = vmatpush.msra.mxu0 %v876
        %1057 = vmatpush.msra.mxu0 %v874
        %1058 = vmatpush.msra.mxu0 %v872
        %1059 = vmatpush.msra.mxu0 %v870
        %1060 = vmatpush.msra.mxu0 %v868
        %1061 = vmatpush.msra.mxu0 %v866
        %1062 = vmatpush.msra.mxu0 %v864
        %1063 = vmatpush.msra.mxu0 %v862
        %1064 = vmatpush.msra.mxu0 %v860
        %1065 = vmatpush.msra.mxu0 %v858
        %1066 = vmatpush.msra.mxu0 %v856
        %1067 = vmatpush.msra.mxu0 %v854
        %1068 = vmatpush.msra.mxu0 %v852
        %1069 = vmatpush.msra.mxu0 %v850
        %1070 = vmatpush.msra.mxu0 %v848
        %1071 = vmatpush.msra.mxu0 %v846
        %1072 = vmatmul.f32.gmra.mxu0 %v878
        %v1073 = vpop.f32.mrf.mxu0
        %v1074 = vadd.f32 %v914, %v1073
        %1075 = vmatmul.f32.gmra.mxu0 %v879
        %v1076 = vpop.f32.mrf.mxu0
        %v1077 = vadd.f32 %v919, %v1076
        %1078 = vmatmul.f32.gmra.mxu0 %v880
        %v1079 = vpop.f32.mrf.mxu0
        %v1080 = vadd.f32 %v924, %v1079
        %1081 = vmatmul.f32.gmra.mxu0 %v881
        %v1082 = vpop.f32.mrf.mxu0
        %v1083 = vadd.f32 %v929, %v1082
        %1084 = vmatmul.f32.gmra.mxu0 %v882
        %v1085 = vpop.f32.mrf.mxu0
        %v1086 = vadd.f32 %v934, %v1085
        %1087 = vmatmul.f32.gmra.mxu0 %v883
        %v1088 = vpop.f32.mrf.mxu0
        %v1089 = vadd.f32 %v939, %v1088
        %1090 = vmatmul.f32.gmra.mxu0 %v884
        %v1091 = vpop.f32.mrf.mxu0
        %v1092 = vadd.f32 %v944, %v1091
        %1093 = vmatmul.f32.gmra.mxu0 %v885
        %v1094 = vpop.f32.mrf.mxu0
        %v1095 = vadd.f32 %v949, %v1094
        %1096 = vmatmul.f32.gmra.mxu0 %v886
        %v1097 = vpop.f32.mrf.mxu0
        %v1098 = vadd.f32 %v954, %v1097
        %1099 = vmatmul.f32.gmra.mxu0 %v887
        %v1100 = vpop.f32.mrf.mxu0
        %v1101 = vadd.f32 %v959, %v1100
        %1102 = vmatmul.f32.gmra.mxu0 %v888
        %v1103 = vpop.f32.mrf.mxu0
        %v1104 = vadd.f32 %v964, %v1103
        %1105 = vmatmul.f32.gmra.mxu0 %v889
        %v1106 = vpop.f32.mrf.mxu0
        %v1107 = vadd.f32 %v969, %v1106
        %1108 = vmatmul.f32.gmra.mxu0 %v890
        %v1109 = vpop.f32.mrf.mxu0
        %v1110 = vadd.f32 %v974, %v1109
        %1111 = vmatmul.f32.gmra.mxu0 %v891
        %v1112 = vpop.f32.mrf.mxu0
        %v1113 = vadd.f32 %v979, %v1112
        %1114 = vmatmul.f32.gmra.mxu0 %v892
        %v1115 = vpop.f32.mrf.mxu0
        %v1116 = vadd.f32 %v984, %v1115
        %1117 = vmatmul.f32.gmra.mxu0 %v893
        %v1118 = vpop.f32.mrf.mxu0
        %v1119 = vadd.f32 %v989, %v1118
        %1120 = vdwg.mxu0
        %v1121 = vmax.f32 %v1009, 0.0
        %v1122 = vmax.f32 %v1074, 0.0
        %v1123 = vmax.f32 %v1012, 0.0
        %v1124 = vmax.f32 %v1077, 0.0
        %v1125 = vmax.f32 %v1015, 0.0
        %v1126 = vmax.f32 %v1080, 0.0
        %v1127 = vmax.f32 %v1018, 0.0
        %v1128 = vmax.f32 %v1083, 0.0
        %v1129 = vmax.f32 %v1021, 0.0
        %v1130 = vmax.f32 %v1086, 0.0
        %v1131 = vmax.f32 %v1024, 0.0
        %v1132 = vmax.f32 %v1089, 0.0
        %v1133 = vmax.f32 %v1027, 0.0
        %v1134 = vmax.f32 %v1092, 0.0
        %v1135 = vmax.f32 %v1030, 0.0
        %v1136 = vmax.f32 %v1095, 0.0
        %v1137 = vmax.f32 %v1033, 0.0
        %v1138 = vmax.f32 %v1098, 0.0
        %v1139 = vmax.f32 %v1036, 0.0
        %v1140 = vmax.f32 %v1101, 0.0
        %v1141 = vmax.f32 %v1039, 0.0
        %v1142 = vmax.f32 %v1104, 0.0
        %v1143 = vmax.f32 %v1042, 0.0
        %v1144 = vmax.f32 %v1107, 0.0
        %v1145 = vmax.f32 %v1045, 0.0
        %v1146 = vmax.f32 %v1110, 0.0
        %v1147 = vmax.f32 %v1048, 0.0
        %v1148 = vmax.f32 %v1113, 0.0
        %v1149 = vmax.f32 %v1051, 0.0
        %v1150 = vmax.f32 %v1116, 0.0
        %v1151 = vmax.f32 %v1054, 0.0
        %v1152 = vmax.f32 %v1119, 0.0
        %s1153 = scalar_lea.vmem %s2, 384
        %v1154 = vld [vmem:[%s1153] sm:$0xff]
        %v1155 = vld [vmem:[%s1153 + $0x8] sm:$0xff]
        %v1156 = vld [vmem:[%s1153 + $0x10] sm:$0xff]
        %v1157 = vld [vmem:[%s1153 + $0x18] sm:$0xff]
        %v1158 = vld [vmem:[%s1153 + $0x20] sm:$0xff]
        %v1159 = vld [vmem:[%s1153 + $0x28] sm:$0xff]
        %v1160 = vld [vmem:[%s1153 + $0x30] sm:$0xff]
        %v1161 = vld [vmem:[%s1153 + $0x38] sm:$0xff]
        %v1162 = vld [vmem:[%s1153 + $0x40] sm:$0xff]
        %v1163 = vld [vmem:[%s1153 + $0x48] sm:$0xff]
        %v1164 = vld [vmem:[%s1153 + $0x50] sm:$0xff]
        %v1165 = vld [vmem:[%s1153 + $0x58] sm:$0xff]
        %v1166 = vld [vmem:[%s1153 + $0x60] sm:$0xff]
        %v1167 = vld [vmem:[%s1153 + $0x68] sm:$0xff]
        %v1168 = vld [vmem:[%s1153 + $0x70] sm:$0xff]
        %v1169 = vld [vmem:[%s1153 + $0x78] sm:$0xff]
        %s1170 = scalar_lea.vmem %s3, 384
        %v1171 = vld [vmem:[%s1170] sm:$0xff]
        %v1172 = vld [vmem:[%s1170 + $0x8] sm:$0xff]
        %v1173 = vld [vmem:[%s1170 + $0x10] sm:$0xff]
        %v1174 = vld [vmem:[%s1170 + $0x18] sm:$0xff]
        %v1175 = vld [vmem:[%s1170 + $0x20] sm:$0xff]
        %v1176 = vld [vmem:[%s1170 + $0x28] sm:$0xff]
        %v1177 = vld [vmem:[%s1170 + $0x30] sm:$0xff]
        %v1178 = vld [vmem:[%s1170 + $0x38] sm:$0xff]
        %v1179 = vld [vmem:[%s1170 + $0x40] sm:$0xff]
        %v1180 = vld [vmem:[%s1170 + $0x48] sm:$0xff]
        %v1181 = vld [vmem:[%s1170 + $0x50] sm:$0xff]
        %v1182 = vld [vmem:[%s1170 + $0x58] sm:$0xff]
        %v1183 = vld [vmem:[%s1170 + $0x60] sm:$0xff]
        %v1184 = vld [vmem:[%s1170 + $0x68] sm:$0xff]
        %v1185 = vld [vmem:[%s1170 + $0x70] sm:$0xff]
        %v1186 = vld [vmem:[%s1170 + $0x78] sm:$0xff]
        %1188 = vset.pattern.permute.xlu0 0
        %1189 = vperm.xlu0 %1188, %v1171
        %v1190 = vpop.permute.xlu0 %1189
        %1193 = vset.pattern.permute.xlu0 0
        %1194 = vperm.xlu0 %1193, %v1172
        %v1195 = vpop.permute.xlu0 %1194
        %1198 = vset.pattern.permute.xlu0 0
        %1199 = vperm.xlu0 %1198, %v1173
        %v1200 = vpop.permute.xlu0 %1199
        %1203 = vset.pattern.permute.xlu0 0
        %1204 = vperm.xlu0 %1203, %v1174
        %v1205 = vpop.permute.xlu0 %1204
        %1208 = vset.pattern.permute.xlu0 0
        %1209 = vperm.xlu0 %1208, %v1175
        %v1210 = vpop.permute.xlu0 %1209
        %1213 = vset.pattern.permute.xlu0 0
        %1214 = vperm.xlu0 %1213, %v1176
        %v1215 = vpop.permute.xlu0 %1214
        %1218 = vset.pattern.permute.xlu0 0
        %1219 = vperm.xlu0 %1218, %v1177
        %v1220 = vpop.permute.xlu0 %1219
        %1223 = vset.pattern.permute.xlu0 0
        %1224 = vperm.xlu0 %1223, %v1178
        %v1225 = vpop.permute.xlu0 %1224
        %1228 = vset.pattern.permute.xlu0 0
        %1229 = vperm.xlu0 %1228, %v1179
        %v1230 = vpop.permute.xlu0 %1229
        %1233 = vset.pattern.permute.xlu0 0
        %1234 = vperm.xlu0 %1233, %v1180
        %v1235 = vpop.permute.xlu0 %1234
        %1238 = vset.pattern.permute.xlu0 0
        %1239 = vperm.xlu0 %1238, %v1181
        %v1240 = vpop.permute.xlu0 %1239
        %1243 = vset.pattern.permute.xlu0 0
        %1244 = vperm.xlu0 %1243, %v1182
        %v1245 = vpop.permute.xlu0 %1244
        %1248 = vset.pattern.permute.xlu0 0
        %1249 = vperm.xlu0 %1248, %v1183
        %v1250 = vpop.permute.xlu0 %1249
        %1253 = vset.pattern.permute.xlu0 0
        %1254 = vperm.xlu0 %1253, %v1184
        %v1255 = vpop.permute.xlu0 %1254
        %1258 = vset.pattern.permute.xlu0 0
        %1259 = vperm.xlu0 %1258, %v1185
        %v1260 = vpop.permute.xlu0 %1259
        %1263 = vset.pattern.permute.xlu0 0
        %1264 = vperm.xlu0 %1263, %v1186
        %v1265 = vpop.permute.xlu0 %1264
        %1267 = vmatpush.msra.mxu0 %v1151
        %1268 = vmatpush.msra.mxu0 %v1149
        %1269 = vmatpush.msra.mxu0 %v1147
        %1270 = vmatpush.msra.mxu0 %v1145
        %1271 = vmatpush.msra.mxu0 %v1143
        %1272 = vmatpush.msra.mxu0 %v1141
        %1273 = vmatpush.msra.mxu0 %v1139
        %1274 = vmatpush.msra.mxu0 %v1137
        %1275 = vmatpush.msra.mxu0 %v1135
        %1276 = vmatpush.msra.mxu0 %v1133
        %1277 = vmatpush.msra.mxu0 %v1131
        %1278 = vmatpush.msra.mxu0 %v1129
        %1279 = vmatpush.msra.mxu0 %v1127
        %1280 = vmatpush.msra.mxu0 %v1125
        %1281 = vmatpush.msra.mxu0 %v1123
        %1282 = vmatpush.msra.mxu0 %v1121
        %1283 = vmatmul.f32.gmra.mxu0 %v1154
        %v1284 = vpop.f32.mrf.mxu0
        %v1285 = vadd.f32 %v1190, %v1284
        %1286 = vmatmul.f32.gmra.mxu0 %v1155
        %v1287 = vpop.f32.mrf.mxu0
        %v1288 = vadd.f32 %v1195, %v1287
        %1289 = vmatmul.f32.gmra.mxu0 %v1156
        %v1290 = vpop.f32.mrf.mxu0
        %v1291 = vadd.f32 %v1200, %v1290
        %1292 = vmatmul.f32.gmra.mxu0 %v1157
        %v1293 = vpop.f32.mrf.mxu0
        %v1294 = vadd.f32 %v1205, %v1293
        %1295 = vmatmul.f32.gmra.mxu0 %v1158
        %v1296 = vpop.f32.mrf.mxu0
        %v1297 = vadd.f32 %v1210, %v1296
        %1298 = vmatmul.f32.gmra.mxu0 %v1159
        %v1299 = vpop.f32.mrf.mxu0
        %v1300 = vadd.f32 %v1215, %v1299
        %1301 = vmatmul.f32.gmra.mxu0 %v1160
        %v1302 = vpop.f32.mrf.mxu0
        %v1303 = vadd.f32 %v1220, %v1302
        %1304 = vmatmul.f32.gmra.mxu0 %v1161
        %v1305 = vpop.f32.mrf.mxu0
        %v1306 = vadd.f32 %v1225, %v1305
        %1307 = vmatmul.f32.gmra.mxu0 %v1162
        %v1308 = vpop.f32.mrf.mxu0
        %v1309 = vadd.f32 %v1230, %v1308
        %1310 = vmatmul.f32.gmra.mxu0 %v1163
        %v1311 = vpop.f32.mrf.mxu0
        %v1312 = vadd.f32 %v1235, %v1311
        %1313 = vmatmul.f32.gmra.mxu0 %v1164
        %v1314 = vpop.f32.mrf.mxu0
        %v1315 = vadd.f32 %v1240, %v1314
        %1316 = vmatmul.f32.gmra.mxu0 %v1165
        %v1317 = vpop.f32.mrf.mxu0
        %v1318 = vadd.f32 %v1245, %v1317
        %1319 = vmatmul.f32.gmra.mxu0 %v1166
        %v1320 = vpop.f32.mrf.mxu0
        %v1321 = vadd.f32 %v1250, %v1320
        %1322 = vmatmul.f32.gmra.mxu0 %v1167
        %v1323 = vpop.f32.mrf.mxu0
        %v1324 = vadd.f32 %v1255, %v1323
        %1325 = vmatmul.f32.gmra.mxu0 %v1168
        %v1326 = vpop.f32.mrf.mxu0
        %v1327 = vadd.f32 %v1260, %v1326
        %1328 = vmatmul.f32.gmra.mxu0 %v1169
        %v1329 = vpop.f32.mrf.mxu0
        %v1330 = vadd.f32 %v1265, %v1329
        %1331 = vdwg.mxu0
        %1332 = vmatpush.msra.mxu0 %v1152
        %1333 = vmatpush.msra.mxu0 %v1150
        %1334 = vmatpush.msra.mxu0 %v1148
        %1335 = vmatpush.msra.mxu0 %v1146
        %1336 = vmatpush.msra.mxu0 %v1144
        %1337 = vmatpush.msra.mxu0 %v1142
        %1338 = vmatpush.msra.mxu0 %v1140
        %1339 = vmatpush.msra.mxu0 %v1138
        %1340 = vmatpush.msra.mxu0 %v1136
        %1341 = vmatpush.msra.mxu0 %v1134
        %1342 = vmatpush.msra.mxu0 %v1132
        %1343 = vmatpush.msra.mxu0 %v1130
        %1344 = vmatpush.msra.mxu0 %v1128
        %1345 = vmatpush.msra.mxu0 %v1126
        %1346 = vmatpush.msra.mxu0 %v1124
        %1347 = vmatpush.msra.mxu0 %v1122
        %1348 = vmatmul.f32.gmra.mxu0 %v1154
        %v1349 = vpop.f32.mrf.mxu0
        %v1350 = vadd.f32 %v1190, %v1349
        %1351 = vmatmul.f32.gmra.mxu0 %v1155
        %v1352 = vpop.f32.mrf.mxu0
        %v1353 = vadd.f32 %v1195, %v1352
        %1354 = vmatmul.f32.gmra.mxu0 %v1156
        %v1355 = vpop.f32.mrf.mxu0
        %v1356 = vadd.f32 %v1200, %v1355
        %1357 = vmatmul.f32.gmra.mxu0 %v1157
        %v1358 = vpop.f32.mrf.mxu0
        %v1359 = vadd.f32 %v1205, %v1358
        %1360 = vmatmul.f32.gmra.mxu0 %v1158
        %v1361 = vpop.f32.mrf.mxu0
        %v1362 = vadd.f32 %v1210, %v1361
        %1363 = vmatmul.f32.gmra.mxu0 %v1159
        %v1364 = vpop.f32.mrf.mxu0
        %v1365 = vadd.f32 %v1215, %v1364
        %1366 = vmatmul.f32.gmra.mxu0 %v1160
        %v1367 = vpop.f32.mrf.mxu0
        %v1368 = vadd.f32 %v1220, %v1367
        %1369 = vmatmul.f32.gmra.mxu0 %v1161
        %v1370 = vpop.f32.mrf.mxu0
        %v1371 = vadd.f32 %v1225, %v1370
        %1372 = vmatmul.f32.gmra.mxu0 %v1162
        %v1373 = vpop.f32.mrf.mxu0
        %v1374 = vadd.f32 %v1230, %v1373
        %1375 = vmatmul.f32.gmra.mxu0 %v1163
        %v1376 = vpop.f32.mrf.mxu0
        %v1377 = vadd.f32 %v1235, %v1376
        %1378 = vmatmul.f32.gmra.mxu0 %v1164
        %v1379 = vpop.f32.mrf.mxu0
        %v1380 = vadd.f32 %v1240, %v1379
        %1381 = vmatmul.f32.gmra.mxu0 %v1165
        %v1382 = vpop.f32.mrf.mxu0
        %v1383 = vadd.f32 %v1245, %v1382
        %1384 = vmatmul.f32.gmra.mxu0 %v1166
        %v1385 = vpop.f32.mrf.mxu0
        %v1386 = vadd.f32 %v1250, %v1385
        %1387 = vmatmul.f32.gmra.mxu0 %v1167
        %v1388 = vpop.f32.mrf.mxu0
        %v1389 = vadd.f32 %v1255, %v1388
        %1390 = vmatmul.f32.gmra.mxu0 %v1168
        %v1391 = vpop.f32.mrf.mxu0
        %v1392 = vadd.f32 %v1260, %v1391
        %1393 = vmatmul.f32.gmra.mxu0 %v1169
        %v1394 = vpop.f32.mrf.mxu0
        %v1395 = vadd.f32 %v1265, %v1394
        %1396 = vdwg.mxu0
        %v1397 = vmax.f32 %v1285, 0.0
        %v1398 = vmax.f32 %v1350, 0.0
        %v1399 = vmax.f32 %v1288, 0.0
        %v1400 = vmax.f32 %v1353, 0.0
        %v1401 = vmax.f32 %v1291, 0.0
        %v1402 = vmax.f32 %v1356, 0.0
        %v1403 = vmax.f32 %v1294, 0.0
        %v1404 = vmax.f32 %v1359, 0.0
        %v1405 = vmax.f32 %v1297, 0.0
        %v1406 = vmax.f32 %v1362, 0.0
        %v1407 = vmax.f32 %v1300, 0.0
        %v1408 = vmax.f32 %v1365, 0.0
        %v1409 = vmax.f32 %v1303, 0.0
        %v1410 = vmax.f32 %v1368, 0.0
        %v1411 = vmax.f32 %v1306, 0.0
        %v1412 = vmax.f32 %v1371, 0.0
        %v1413 = vmax.f32 %v1309, 0.0
        %v1414 = vmax.f32 %v1374, 0.0
        %v1415 = vmax.f32 %v1312, 0.0
        %v1416 = vmax.f32 %v1377, 0.0
        %v1417 = vmax.f32 %v1315, 0.0
        %v1418 = vmax.f32 %v1380, 0.0
        %v1419 = vmax.f32 %v1318, 0.0
        %v1420 = vmax.f32 %v1383, 0.0
        %v1421 = vmax.f32 %v1321, 0.0
        %v1422 = vmax.f32 %v1386, 0.0
        %v1423 = vmax.f32 %v1324, 0.0
        %v1424 = vmax.f32 %v1389, 0.0
        %v1425 = vmax.f32 %v1327, 0.0
        %v1426 = vmax.f32 %v1392, 0.0
        %v1427 = vmax.f32 %v1330, 0.0
        %v1428 = vmax.f32 %v1395, 0.0
        %v1429 = vld [vmem:[%s4] sm:$0x1]
        %s1430 = sld [smem:[#allocation3]]
        %v1431 = vld [vmem:[%s312] sm:$0x3]
        %v1432 = vstv %s1430
        %v1433 = vmul.f32 %v1432, %v1431
        %v1435 = vperm.slane %v1433, 0
        %v1436 = vperm.slane %v1433, 1
        %1439 = vmatpush.msra.mxu0 %v1427
        %1440 = vmatpush.msra.mxu0 %v1425
        %1441 = vmatpush.msra.mxu0 %v1423
        %1442 = vmatpush.msra.mxu0 %v1421
        %1443 = vmatpush.msra.mxu0 %v1419
        %1444 = vmatpush.msra.mxu0 %v1417
        %1445 = vmatpush.msra.mxu0 %v1415
        %1446 = vmatpush.msra.mxu0 %v1413
        %1447 = vmatpush.msra.mxu0 %v1411
        %1448 = vmatpush.msra.mxu0 %v1409
        %1449 = vmatpush.msra.mxu0 %v1407
        %1450 = vmatpush.msra.mxu0 %v1405
        %1451 = vmatpush.msra.mxu0 %v1403
        %1452 = vmatpush.msra.mxu0 %v1401
        %1453 = vmatpush.msra.mxu0 %v1399
        %1454 = vmatpush.msra.mxu0 %v1397
        %1455 = vmatmul.f32.gmra.mxu0 %v1429
        %v1456 = vpop.f32.mrf.mxu0
        %v1457 = vadd.f32 %v1435, %v1456
        %1458 = vdwg.mxu0
        %1459 = vmatpush.msra.mxu0 %v1428
        %1460 = vmatpush.msra.mxu0 %v1426
        %1461 = vmatpush.msra.mxu0 %v1424
        %1462 = vmatpush.msra.mxu0 %v1422
        %1463 = vmatpush.msra.mxu0 %v1420
        %1464 = vmatpush.msra.mxu0 %v1418
        %1465 = vmatpush.msra.mxu0 %v1416
        %1466 = vmatpush.msra.mxu0 %v1414
        %1467 = vmatpush.msra.mxu0 %v1412
        %1468 = vmatpush.msra.mxu0 %v1410
        %1469 = vmatpush.msra.mxu0 %v1408
        %1470 = vmatpush.msra.mxu0 %v1406
        %1471 = vmatpush.msra.mxu0 %v1404
        %1472 = vmatpush.msra.mxu0 %v1402
        %1473 = vmatpush.msra.mxu0 %v1400
        %1474 = vmatpush.msra.mxu0 %v1398
        %1475 = vmatmul.f32.gmra.mxu0 %v1429
        %v1476 = vpop.f32.mrf.mxu0
        %v1477 = vadd.f32 %v1436, %v1476
        %1478 = vdwg.mxu0
        %s1479 = sld [smem:[#allocation3 + $0x1]]
        %v1480 = vstv %s1479
        %v1481 = vadd.f32 %v1457, %v1480
        %v1482 = vadd.f32 %v1477, %v1480
        %v1483 = vsub.f32 0.0, %v1481
        %v1484 = vsub.f32 0.0, %v1482
        %v1485 = vmul.f32 %v1483, 1.442695
        %v1486 = vpow.pop %v1485
        %v1487 = vmul.f32 %v1484, 1.442695
        %v1488 = vpow.pop %v1487
        %v1489 = vadd.f32 %v1486, 1.0
        %v1490 = vadd.f32 %v1488, 1.0
        %v1491 = vrcp.pop %v1489
        %v1492 = vrcp.pop %v1490
        %v1495 = vrot.slane %v1492, 7
        %vm1496 = vcmask 1040384
        %v1497 = vsel %vm1496, %v1491, %v1495
        %v1499 = vlaneseq
        %vm1500 = vcmp.ge.s32.totalorder %v1499, 0
        %vm1501 = vcmp.lt.s32.totalorder %v1499, 256
        %vm1502 = vmand %vm1500, %vm1501
        %1503 = vst.msk [vmem:[%s317] sm:$0x3] %vm1502, %v1497
        %s1504 = smul.u32 2, %s18
        %p1505 = scmp.lt.s32.totalorder %s1504, 3
        %s1506 = scalar_select %p1505, %s1504, 3
        %s1507 = scalar_lea.vmem %s6, %s1506
        // Predicated region
        $region72: #{full_forward.1} parent=62 // pred_check
          %p1508 = pneg %p172
        $region73: #{full_forward.1} parent=62 // pred_check_branch
          %1510 = sbr.rel (%p1508) target = $region75
        $region74: #{full_forward.1} parent=62 // pred_region
          %s1511 = smul.u32 2, %s18
        $region75: #{full_forward.1} parent=62 // pred_fallthru
          _
      $region63: #{full_forward.1} parent=5 // pred_fallthru
        _
      %p1512 = scmp.le.s32.totalorder 2, %s13
      // Predicated region
      $region76: #{full_forward.1} parent=5 // pred_check
        %p1513 = pneg %p1512
      $region77: #{full_forward.1} parent=5 // pred_check_branch
        %1515 = sbr.rel (%p1513) target = $region79
      $region78: #{full_forward.1} parent=5 // pred_region
        %s1516 = ssub.s32 %s13, 2
        // Predicated region
        $region80: #{full_forward.1} parent=78 // pred_check
          %p1517 = pneg %p178
        $region81: #{full_forward.1} parent=78 // pred_check_branch
          %1519 = sbr.rel (%p1517) target = $region83
        $region82: #{full_forward.1} parent=78 // pred_region
          %s1520 = smul.u32 2, %s19
          %p1521 = scmp.lt.s32.totalorder %s1520, 3
          %s1522 = scalar_select %p1521, %s1520, 3
          %s1523 = scalar_lea.vmem %s6, %s1522
        $region83: #{full_forward.1} parent=78 // pred_fallthru
          _
      $region79: #{full_forward.1} parent=5 // pred_fallthru
        _
    $region6: #{full_forward.1} parent=1 // loop_footer
      %s17 = sadd.s32 1, %s13
    $region7: #{full_forward.1} parent=1 // loop_footer_branch
      %12 = sbr.rel target = $region3
    $region8: #{full_forward.1} parent=1 // loop_exit
      _
    %1524 = vsyncpa [#allocation4], 1
    %s1525 = scalar_lea.sflag [#allocation4], 1
    %1526 = vsyncpa %s1525, 1

</llo_original>
